<compile_context>
chip_gen: v5e
topology: v5e:2x2
jax: 0.10.0
libtpu: 0.0.40
codegen_flags: <defaults>
</compile_context>

<pallas_src>
import functools

import jax
import jax.numpy as jnp
from jax import lax
from jax.experimental import pallas as pl
from jax.experimental.pallas import tpu as pltpu

WORD_EMB_DIM = 100
DECODER_DIM = 16
FC_IN = 47 * 16                       # 752 (fixed by the module's __init__)
RETRIEVED_DIM = FC_IN - DECODER_DIM   # 736, so cat(h_t, retrieved) has width 752
HEAD_HID = DECODER_DIM * 2            # 32
VOCAB = 50                            # small synthetic word_dic.get_len()
LANE = 128


def _round_up(x, m):
    return (x + m - 1) // m * m


def decoder_kernel(ids_ref, emb_ref,
                   h_ref, c_ref, r_ref,
                   wr_ref, bhc_ref, wh0_ref, wc0_ref,
                   wih_ref, whh_ref, blstm_ref,
                   wh1_ref, bh1_ref, wh2_ref, bh2_ref,
                   out_ref,
                   x_scr, h_all):
    """Embedding gather + init-state FCs + LSTM recurrence + batched MLP head.

    ids_ref:  (B, T)  int32 token ids, SMEM
    emb_ref:  (V, 1, 100) embedding table, VMEM
    h_ref/c_ref: (B, 16) previous states
    r_ref:    (B, 736)   retrieved vector
    out_ref:  (T*B, VPAD) logits, time-major rows (row = t*B + b), lane-dense
    x_scr:    (T*B, 100) gathered embeddings scratch
    h_all:    (T*B, 16)  hidden states for all timesteps
    """
    H = DECODER_DIM
    B = ids_ref.shape[0]
    T = ids_ref.shape[1]

    # ---- in-kernel embedding gather (row = t*B + b, time-major flat) ----
    for t in range(T):
        for b in range(B):
            idx = ids_ref[b, t]                       # scalar from SMEM
            x_scr[pl.ds(t * B + b, 1), :] = emb_ref[idx]   # (1, 100)

    # ---- fused fc_h / fc_c: traverse `retrieved` (K=736) only once ----
    rproj = jnp.dot(r_ref[...], wr_ref[...],
                    preferred_element_type=jnp.float32) + bhc_ref[...]   # (B, 32)
    h = jnp.dot(h_ref[...], wh0_ref[...],
                preferred_element_type=jnp.float32) + rproj[:, :H]       # (B, 16)
    c = jnp.dot(c_ref[...], wc0_ref[...],
                preferred_element_type=jnp.float32) + rproj[:, H:]       # (B, 16)

    # ---- input projection for all timesteps, hoisted out of recurrence ----
    gates_x = jnp.dot(x_scr[...], wih_ref[...],
                      preferred_element_type=jnp.float32) + blstm_ref[...]  # (T*B, 64)

    w_hh = whh_ref[...]   # hoist recurrent weight load out of the loop

    # ---- serial recurrence: only h @ w_hh + elementwise per step ----
    for t in range(T):  # static unroll; T is small
        gates = gates_x[t * B:(t + 1) * B, :] + jnp.dot(
            h, w_hh, preferred_element_type=jnp.float32)                 # (B, 64)
        sig = jax.nn.sigmoid(gates)            # one EUP pass over all 64 lanes
        g_g = jnp.tanh(gates[:, 2 * H:3 * H])
        i_g = sig[:, 0 * H:1 * H]
        f_g = sig[:, 1 * H:2 * H]
        o_g = sig[:, 3 * H:4 * H]
        c = f_g * c + i_g * g_g
        h = o_g * jnp.tanh(c)
        h_all[pl.ds(t * B, B), :] = h

    # ---- batched MLP head over all timesteps + single lane-dense store ----
    hs = h_all[...]                                                      # (T*B, 16)
    z = jnp.maximum(
        jnp.dot(hs, wh1_ref[...], preferred_element_type=jnp.float32)
        + bh1_ref[...], 0.0)                                             # (T*B, 32)
    logits = (jnp.dot(z, wh2_ref[...], preferred_element_type=jnp.float32)
              + bh2_ref[...])                                            # (T*B, VPAD)
    out_ref[...] = logits.astype(out_ref.dtype)


def decoder_with_hp_forward(params, target_input, h_t, c_t, retrieved):
    """Wrapper matching the PyTorch forward signature.

    target_input: (B, T) int32 token ids
    h_t, c_t:     (1, B, 16)
    retrieved:    (B, 736)
    returns:      (B, T, VOCAB) float32 logits
    """
    B, T = target_input.shape
    H = DECODER_DIM
    V = params['emb'].shape[0]
    VPAD = _round_up(V, LANE)

    # Pack fc_h / fc_c so the 736-wide retrieved contraction runs once.
    w_r = jnp.concatenate([params['w_fh'][H:], params['w_fc'][H:]], axis=1)  # (736, 32)
    b_hc = jnp.concatenate([params['b_fh'], params['b_fc']], axis=1)         # (1, 32)
    w_h0 = params['w_fh'][:H]                                                # (16, 16)
    w_c0 = params['w_fc'][:H]                                                # (16, 16)

    # Lane-dense head output: pad the vocab dim to a multiple of 128.
    w_h2p = jnp.pad(params['w_h2'], ((0, 0), (0, VPAD - V)))
    b_h2p = jnp.pad(params['b_h2'], ((0, 0), (0, VPAD - V)))

    # (V, 1, 100) so the kernel gathers rows by pure major-dim dynamic index.
    emb3 = params['emb'].reshape(V, 1, WORD_EMB_DIM)

    vmem = functools.partial(pl.BlockSpec, memory_space=pltpu.MemorySpace.VMEM)
    smem = functools.partial(pl.BlockSpec, memory_space=pltpu.MemorySpace.SMEM)

    out2d = pl.pallas_call(
        decoder_kernel,
        out_shape=jax.ShapeDtypeStruct((T * B, VPAD), jnp.float32),
        in_specs=[smem()] + [vmem() for _ in range(15)],
        out_specs=vmem(),
        scratch_shapes=[pltpu.VMEM((T * B, WORD_EMB_DIM), jnp.float32),
                        pltpu.VMEM((T * B, H), jnp.float32)],
    )(target_input.astype(jnp.int32), emb3,
      h_t[0], c_t[0], retrieved,
      w_r, b_hc, w_h0, w_c0,
      params['w_ih'], params['w_hh'], params['b_lstm'],
      params['w_h1'], params['b_h1'], w_h2p, b_h2p)

    # time-major flat rows -> (B, T, V)
    out = out2d.reshape(T, B, VPAD)[:, :, :V]
    return jnp.transpose(out, (1, 0, 2))


def reference_forward(params, target_input, h_t, c_t, retrieved):
    """Pure-JAX reference (mirrors the PyTorch semantics)."""
    H = DECODER_DIM
    hcat = jnp.concatenate([h_t[0], retrieved], axis=-1)
    ccat = jnp.concatenate([c_t[0], retrieved], axis=-1)
    h = hcat @ params['w_fh'] + params['b_fh'][0]
    c = ccat @ params['w_fc'] + params['b_fc'][0]
    x = jnp.take(params['emb'], target_input, axis=0)      # (B, T, 100)

    def step(carry, x_t):
        h, c = carry
        gates = x_t @ params['w_ih'] + h @ params['w_hh'] + params['b_lstm'][0]
        i = jax.nn.sigmoid(gates[:, 0 * H:1 * H])
        f = jax.nn.sigmoid(gates[:, 1 * H:2 * H])
        g = jnp.tanh(gates[:, 2 * H:3 * H])
        o = jax.nn.sigmoid(gates[:, 3 * H:4 * H])
        c = f * c + i * g
        h = o * jnp.tanh(c)
        return (h, c), h

    (_, _), hs = lax.scan(step, (h, c), jnp.transpose(x, (1, 0, 2)))
    hs = jnp.transpose(hs, (1, 0, 2))                      # (B, T, 16)
    z = jnp.maximum(hs @ params['w_h1'] + params['b_h1'][0], 0.0)
    return z @ params['w_h2'] + params['b_h2'][0]


def init_params(key):
    # TODO(synk): GloVe embedding file / word_dic not available; word embedding
    # table is initialized deterministically instead of loaded from glove.6B.
    ks = jax.random.split(key, 12)
    s = 0.1
    return {
        'emb':    jax.random.normal(ks[0], (VOCAB, WORD_EMB_DIM), jnp.float32) * s,
        'w_fh':   jax.random.normal(ks[1], (FC_IN, DECODER_DIM), jnp.float32) * s,
        'b_fh':   jax.random.normal(ks[2], (1, DECODER_DIM), jnp.float32) * s,
        'w_fc':   jax.random.normal(ks[3], (FC_IN, DECODER_DIM), jnp.float32) * s,
        'b_fc':   jax.random.normal(ks[4], (1, DECODER_DIM), jnp.float32) * s,
        'w_ih':   jax.random.normal(ks[5], (WORD_EMB_DIM, 4 * DECODER_DIM), jnp.float32) * s,
        'w_hh':   jax.random.normal(ks[6], (DECODER_DIM, 4 * DECODER_DIM), jnp.float32) * s,
        # combined b_ih + b_hh
        'b_lstm': jax.random.normal(ks[7], (1, 4 * DECODER_DIM), jnp.float32) * s,
        'w_h1':   jax.random.normal(ks[8], (DECODER_DIM, HEAD_HID), jnp.float32) * s,
        'b_h1':   jax.random.normal(ks[9], (1, HEAD_HID), jnp.float32) * s,
        'w_h2':   jax.random.normal(ks[10], (HEAD_HID, VOCAB), jnp.float32) * s,
        'b_h2':   jax.random.normal(ks[11], (1, VOCAB), jnp.float32) * s,
    }


if __name__ == "__main__":
    key = jax.random.PRNGKey(0)
    k_par, k_ids, k_h, k_c, k_r = jax.random.split(key, 5)

    B, T = 2, 8
    params = init_params(k_par)
    target_input = jax.random.randint(k_ids, (B, T), 0, VOCAB, dtype=jnp.int32)
    h_t = jax.random.normal(k_h, (1, B, DECODER_DIM), jnp.float32)
    c_t = jax.random.normal(k_c, (1, B, DECODER_DIM), jnp.float32)
    retrieved = jax.random.normal(k_r, (B, RETRIEVED_DIM), jnp.float32)

    out = decoder_with_hp_forward(params, target_input, h_t, c_t, retrieved)
    out = jax.block_until_ready(out)
    ref = jax.block_until_ready(
        reference_forward(params, target_input, h_t, c_t, retrieved))

    assert out.shape == (B, T, VOCAB), out.shape
    assert jnp.allclose(out, ref, atol=1e-4, rtol=1e-4), float(
        jnp.max(jnp.abs(out - ref)))
    print("KERNEL_OK")
</pallas_src>

<mosaic_0001>
module attributes {stable_mosaic.version = 11 : i64} {
  func.func @decoder_kernel(%arg0: memref<2x8xi32, #tpu.memory_space<smem>>, %arg1: memref<50x1x100xf32, #tpu.memory_space<vmem>>, %arg2: memref<2x16xf32, #tpu.memory_space<vmem>>, %arg3: memref<2x16xf32, #tpu.memory_space<vmem>>, %arg4: memref<2x736xf32, #tpu.memory_space<vmem>>, %arg5: memref<736x32xf32, #tpu.memory_space<vmem>>, %arg6: memref<1x32xf32, #tpu.memory_space<vmem>>, %arg7: memref<16x16xf32, #tpu.memory_space<vmem>>, %arg8: memref<16x16xf32, #tpu.memory_space<vmem>>, %arg9: memref<100x64xf32, #tpu.memory_space<vmem>>, %arg10: memref<16x64xf32, #tpu.memory_space<vmem>>, %arg11: memref<1x64xf32, #tpu.memory_space<vmem>>, %arg12: memref<16x32xf32, #tpu.memory_space<vmem>>, %arg13: memref<1x32xf32, #tpu.memory_space<vmem>>, %arg14: memref<32x128xf32, #tpu.memory_space<vmem>>, %arg15: memref<1x128xf32, #tpu.memory_space<vmem>>, %arg16: memref<16x128xf32, #tpu.memory_space<vmem>>, %arg17: memref<16x100xf32, #tpu.memory_space<vmem>>, %arg18: memref<16x16xf32, #tpu.memory_space<vmem>>) attributes {dimension_semantics = [], scalar_prefetch = 0 : i64, scratch_operands = 2 : i64, tpu.core_type = #tpu.core_type<tc>} {
    %c0 = arith.constant 0 : index
    %c0_0 = arith.constant 0 : index
    %0 = memref.load %arg0[%c0, %c0_0] : memref<2x8xi32, #tpu.memory_space<smem>>
    %1 = arith.index_cast %0 : i32 to index
    %c0_1 = arith.constant 0 : index
    %c0_2 = arith.constant 0 : index
    %2 = vector.load %arg1[%1, %c0_1, %c0_2] : memref<50x1x100xf32, #tpu.memory_space<vmem>>, vector<1x1x100xf32>
    %3 = vector.shape_cast %2 : vector<1x1x100xf32> to vector<1x100xf32>
    %c0_3 = arith.constant 0 : index
    %c0_4 = arith.constant 0 : index
    %4 = vector.load %arg17[%c0_3, %c0_4] : memref<16x100xf32, #tpu.memory_space<vmem>>, vector<1x100xf32>
    tpu.vector_store %arg17[%c0_3, %c0_4], %3 {strides = array<i32>} : memref<16x100xf32, #tpu.memory_space<vmem>>, vector<1x100xf32>,
    %c1 = arith.constant 1 : index
    %c0_5 = arith.constant 0 : index
    %5 = memref.load %arg0[%c1, %c0_5] : memref<2x8xi32, #tpu.memory_space<smem>>
    %6 = arith.index_cast %5 : i32 to index
    %c0_6 = arith.constant 0 : index
    %c0_7 = arith.constant 0 : index
    %7 = vector.load %arg1[%6, %c0_6, %c0_7] : memref<50x1x100xf32, #tpu.memory_space<vmem>>, vector<1x1x100xf32>
    %8 = vector.shape_cast %7 : vector<1x1x100xf32> to vector<1x100xf32>
    %c1_8 = arith.constant 1 : index
    %c0_9 = arith.constant 0 : index
    %9 = vector.load %arg17[%c1_8, %c0_9] : memref<16x100xf32, #tpu.memory_space<vmem>>, vector<1x100xf32>
    tpu.vector_store %arg17[%c1_8, %c0_9], %8 {strides = array<i32>} : memref<16x100xf32, #tpu.memory_space<vmem>>, vector<1x100xf32>,
    %c0_10 = arith.constant 0 : index
    %c1_11 = arith.constant 1 : index
    %10 = memref.load %arg0[%c0_10, %c1_11] : memref<2x8xi32, #tpu.memory_space<smem>>
    %11 = arith.index_cast %10 : i32 to index
    %c0_12 = arith.constant 0 : index
    %c0_13 = arith.constant 0 : index
    %12 = vector.load %arg1[%11, %c0_12, %c0_13] : memref<50x1x100xf32, #tpu.memory_space<vmem>>, vector<1x1x100xf32>
    %13 = vector.shape_cast %12 : vector<1x1x100xf32> to vector<1x100xf32>
    %c2 = arith.constant 2 : index
    %c0_14 = arith.constant 0 : index
    %14 = vector.load %arg17[%c2, %c0_14] : memref<16x100xf32, #tpu.memory_space<vmem>>, vector<1x100xf32>
    tpu.vector_store %arg17[%c2, %c0_14], %13 {strides = array<i32>} : memref<16x100xf32, #tpu.memory_space<vmem>>, vector<1x100xf32>,
    %c1_15 = arith.constant 1 : index
    %c1_16 = arith.constant 1 : index
    %15 = memref.load %arg0[%c1_15, %c1_16] : memref<2x8xi32, #tpu.memory_space<smem>>
    %16 = arith.index_cast %15 : i32 to index
    %c0_17 = arith.constant 0 : index
    %c0_18 = arith.constant 0 : index
    %17 = vector.load %arg1[%16, %c0_17, %c0_18] : memref<50x1x100xf32, #tpu.memory_space<vmem>>, vector<1x1x100xf32>
    %18 = vector.shape_cast %17 : vector<1x1x100xf32> to vector<1x100xf32>
    %c3 = arith.constant 3 : index
    %c0_19 = arith.constant 0 : index
    %19 = vector.load %arg17[%c3, %c0_19] : memref<16x100xf32, #tpu.memory_space<vmem>>, vector<1x100xf32>
    tpu.vector_store %arg17[%c3, %c0_19], %18 {strides = array<i32>} : memref<16x100xf32, #tpu.memory_space<vmem>>, vector<1x100xf32>,
    %c0_20 = arith.constant 0 : index
    %c2_21 = arith.constant 2 : index
    %20 = memref.load %arg0[%c0_20, %c2_21] : memref<2x8xi32, #tpu.memory_space<smem>>
    %21 = arith.index_cast %20 : i32 to index
    %c0_22 = arith.constant 0 : index
    %c0_23 = arith.constant 0 : index
    %22 = vector.load %arg1[%21, %c0_22, %c0_23] : memref<50x1x100xf32, #tpu.memory_space<vmem>>, vector<1x1x100xf32>
    %23 = vector.shape_cast %22 : vector<1x1x100xf32> to vector<1x100xf32>
    %c4 = arith.constant 4 : index
    %c0_24 = arith.constant 0 : index
    %24 = vector.load %arg17[%c4, %c0_24] : memref<16x100xf32, #tpu.memory_space<vmem>>, vector<1x100xf32>
    tpu.vector_store %arg17[%c4, %c0_24], %23 {strides = array<i32>} : memref<16x100xf32, #tpu.memory_space<vmem>>, vector<1x100xf32>,
    %c1_25 = arith.constant 1 : index
    %c2_26 = arith.constant 2 : index
    %25 = memref.load %arg0[%c1_25, %c2_26] : memref<2x8xi32, #tpu.memory_space<smem>>
    %26 = arith.index_cast %25 : i32 to index
    %c0_27 = arith.constant 0 : index
    %c0_28 = arith.constant 0 : index
    %27 = vector.load %arg1[%26, %c0_27, %c0_28] : memref<50x1x100xf32, #tpu.memory_space<vmem>>, vector<1x1x100xf32>
    %28 = vector.shape_cast %27 : vector<1x1x100xf32> to vector<1x100xf32>
    %c5 = arith.constant 5 : index
    %c0_29 = arith.constant 0 : index
    %29 = vector.load %arg17[%c5, %c0_29] : memref<16x100xf32, #tpu.memory_space<vmem>>, vector<1x100xf32>
    tpu.vector_store %arg17[%c5, %c0_29], %28 {strides = array<i32>} : memref<16x100xf32, #tpu.memory_space<vmem>>, vector<1x100xf32>,
    %c0_30 = arith.constant 0 : index
    %c3_31 = arith.constant 3 : index
    %30 = memref.load %arg0[%c0_30, %c3_31] : memref<2x8xi32, #tpu.memory_space<smem>>
    %31 = arith.index_cast %30 : i32 to index
    %c0_32 = arith.constant 0 : index
    %c0_33 = arith.constant 0 : index
    %32 = vector.load %arg1[%31, %c0_32, %c0_33] : memref<50x1x100xf32, #tpu.memory_space<vmem>>, vector<1x1x100xf32>
    %33 = vector.shape_cast %32 : vector<1x1x100xf32> to vector<1x100xf32>
    %c6 = arith.constant 6 : index
    %c0_34 = arith.constant 0 : index
    %34 = vector.load %arg17[%c6, %c0_34] : memref<16x100xf32, #tpu.memory_space<vmem>>, vector<1x100xf32>
    tpu.vector_store %arg17[%c6, %c0_34], %33 {strides = array<i32>} : memref<16x100xf32, #tpu.memory_space<vmem>>, vector<1x100xf32>,
    %c1_35 = arith.constant 1 : index
    %c3_36 = arith.constant 3 : index
    %35 = memref.load %arg0[%c1_35, %c3_36] : memref<2x8xi32, #tpu.memory_space<smem>>
    %36 = arith.index_cast %35 : i32 to index
    %c0_37 = arith.constant 0 : index
    %c0_38 = arith.constant 0 : index
    %37 = vector.load %arg1[%36, %c0_37, %c0_38] : memref<50x1x100xf32, #tpu.memory_space<vmem>>, vector<1x1x100xf32>
    %38 = vector.shape_cast %37 : vector<1x1x100xf32> to vector<1x100xf32>
    %c7 = arith.constant 7 : index
    %c0_39 = arith.constant 0 : index
    %39 = vector.load %arg17[%c7, %c0_39] : memref<16x100xf32, #tpu.memory_space<vmem>>, vector<1x100xf32>
    tpu.vector_store %arg17[%c7, %c0_39], %38 {strides = array<i32>} : memref<16x100xf32, #tpu.memory_space<vmem>>, vector<1x100xf32>,
    %c0_40 = arith.constant 0 : index
    %c4_41 = arith.constant 4 : index
    %40 = memref.load %arg0[%c0_40, %c4_41] : memref<2x8xi32, #tpu.memory_space<smem>>
    %41 = arith.index_cast %40 : i32 to index
    %c0_42 = arith.constant 0 : index
    %c0_43 = arith.constant 0 : index
    %42 = vector.load %arg1[%41, %c0_42, %c0_43] : memref<50x1x100xf32, #tpu.memory_space<vmem>>, vector<1x1x100xf32>
    %43 = vector.shape_cast %42 : vector<1x1x100xf32> to vector<1x100xf32>
    %c8 = arith.constant 8 : index
    %c0_44 = arith.constant 0 : index
    %44 = vector.load %arg17[%c8, %c0_44] : memref<16x100xf32, #tpu.memory_space<vmem>>, vector<1x100xf32>
    tpu.vector_store %arg17[%c8, %c0_44], %43 {strides = array<i32>} : memref<16x100xf32, #tpu.memory_space<vmem>>, vector<1x100xf32>,
    %c1_45 = arith.constant 1 : index
    %c4_46 = arith.constant 4 : index
    %45 = memref.load %arg0[%c1_45, %c4_46] : memref<2x8xi32, #tpu.memory_space<smem>>
    %46 = arith.index_cast %45 : i32 to index
    %c0_47 = arith.constant 0 : index
    %c0_48 = arith.constant 0 : index
    %47 = vector.load %arg1[%46, %c0_47, %c0_48] : memref<50x1x100xf32, #tpu.memory_space<vmem>>, vector<1x1x100xf32>
    %48 = vector.shape_cast %47 : vector<1x1x100xf32> to vector<1x100xf32>
    %c9 = arith.constant 9 : index
    %c0_49 = arith.constant 0 : index
    %49 = vector.load %arg17[%c9, %c0_49] : memref<16x100xf32, #tpu.memory_space<vmem>>, vector<1x100xf32>
    tpu.vector_store %arg17[%c9, %c0_49], %48 {strides = array<i32>} : memref<16x100xf32, #tpu.memory_space<vmem>>, vector<1x100xf32>,
    %c0_50 = arith.constant 0 : index
    %c5_51 = arith.constant 5 : index
    %50 = memref.load %arg0[%c0_50, %c5_51] : memref<2x8xi32, #tpu.memory_space<smem>>
    %51 = arith.index_cast %50 : i32 to index
    %c0_52 = arith.constant 0 : index
    %c0_53 = arith.constant 0 : index
    %52 = vector.load %arg1[%51, %c0_52, %c0_53] : memref<50x1x100xf32, #tpu.memory_space<vmem>>, vector<1x1x100xf32>
    %53 = vector.shape_cast %52 : vector<1x1x100xf32> to vector<1x100xf32>
    %c10 = arith.constant 10 : index
    %c0_54 = arith.constant 0 : index
    %54 = vector.load %arg17[%c10, %c0_54] : memref<16x100xf32, #tpu.memory_space<vmem>>, vector<1x100xf32>
    tpu.vector_store %arg17[%c10, %c0_54], %53 {strides = array<i32>} : memref<16x100xf32, #tpu.memory_space<vmem>>, vector<1x100xf32>,
    %c1_55 = arith.constant 1 : index
    %c5_56 = arith.constant 5 : index
    %55 = memref.load %arg0[%c1_55, %c5_56] : memref<2x8xi32, #tpu.memory_space<smem>>
    %56 = arith.index_cast %55 : i32 to index
    %c0_57 = arith.constant 0 : index
    %c0_58 = arith.constant 0 : index
    %57 = vector.load %arg1[%56, %c0_57, %c0_58] : memref<50x1x100xf32, #tpu.memory_space<vmem>>, vector<1x1x100xf32>
    %58 = vector.shape_cast %57 : vector<1x1x100xf32> to vector<1x100xf32>
    %c11 = arith.constant 11 : index
    %c0_59 = arith.constant 0 : index
    %59 = vector.load %arg17[%c11, %c0_59] : memref<16x100xf32, #tpu.memory_space<vmem>>, vector<1x100xf32>
    tpu.vector_store %arg17[%c11, %c0_59], %58 {strides = array<i32>} : memref<16x100xf32, #tpu.memory_space<vmem>>, vector<1x100xf32>,
    %c0_60 = arith.constant 0 : index
    %c6_61 = arith.constant 6 : index
    %60 = memref.load %arg0[%c0_60, %c6_61] : memref<2x8xi32, #tpu.memory_space<smem>>
    %61 = arith.index_cast %60 : i32 to index
    %c0_62 = arith.constant 0 : index
    %c0_63 = arith.constant 0 : index
    %62 = vector.load %arg1[%61, %c0_62, %c0_63] : memref<50x1x100xf32, #tpu.memory_space<vmem>>, vector<1x1x100xf32>
    %63 = vector.shape_cast %62 : vector<1x1x100xf32> to vector<1x100xf32>
    %c12 = arith.constant 12 : index
    %c0_64 = arith.constant 0 : index
    %64 = vector.load %arg17[%c12, %c0_64] : memref<16x100xf32, #tpu.memory_space<vmem>>, vector<1x100xf32>
    tpu.vector_store %arg17[%c12, %c0_64], %63 {strides = array<i32>} : memref<16x100xf32, #tpu.memory_space<vmem>>, vector<1x100xf32>,
    %c1_65 = arith.constant 1 : index
    %c6_66 = arith.constant 6 : index
    %65 = memref.load %arg0[%c1_65, %c6_66] : memref<2x8xi32, #tpu.memory_space<smem>>
    %66 = arith.index_cast %65 : i32 to index
    %c0_67 = arith.constant 0 : index
    %c0_68 = arith.constant 0 : index
    %67 = vector.load %arg1[%66, %c0_67, %c0_68] : memref<50x1x100xf32, #tpu.memory_space<vmem>>, vector<1x1x100xf32>
    %68 = vector.shape_cast %67 : vector<1x1x100xf32> to vector<1x100xf32>
    %c13 = arith.constant 13 : index
    %c0_69 = arith.constant 0 : index
    %69 = vector.load %arg17[%c13, %c0_69] : memref<16x100xf32, #tpu.memory_space<vmem>>, vector<1x100xf32>
    tpu.vector_store %arg17[%c13, %c0_69], %68 {strides = array<i32>} : memref<16x100xf32, #tpu.memory_space<vmem>>, vector<1x100xf32>,
    %c0_70 = arith.constant 0 : index
    %c7_71 = arith.constant 7 : index
    %70 = memref.load %arg0[%c0_70, %c7_71] : memref<2x8xi32, #tpu.memory_space<smem>>
    %71 = arith.index_cast %70 : i32 to index
    %c0_72 = arith.constant 0 : index
    %c0_73 = arith.constant 0 : index
    %72 = vector.load %arg1[%71, %c0_72, %c0_73] : memref<50x1x100xf32, #tpu.memory_space<vmem>>, vector<1x1x100xf32>
    %73 = vector.shape_cast %72 : vector<1x1x100xf32> to vector<1x100xf32>
    %c14 = arith.constant 14 : index
    %c0_74 = arith.constant 0 : index
    %74 = vector.load %arg17[%c14, %c0_74] : memref<16x100xf32, #tpu.memory_space<vmem>>, vector<1x100xf32>
    tpu.vector_store %arg17[%c14, %c0_74], %73 {strides = array<i32>} : memref<16x100xf32, #tpu.memory_space<vmem>>, vector<1x100xf32>,
    %c1_75 = arith.constant 1 : index
    %c7_76 = arith.constant 7 : index
    %75 = memref.load %arg0[%c1_75, %c7_76] : memref<2x8xi32, #tpu.memory_space<smem>>
    %76 = arith.index_cast %75 : i32 to index
    %c0_77 = arith.constant 0 : index
    %c0_78 = arith.constant 0 : index
    %77 = vector.load %arg1[%76, %c0_77, %c0_78] : memref<50x1x100xf32, #tpu.memory_space<vmem>>, vector<1x1x100xf32>
    %78 = vector.shape_cast %77 : vector<1x1x100xf32> to vector<1x100xf32>
    %c15 = arith.constant 15 : index
    %c0_79 = arith.constant 0 : index
    %79 = vector.load %arg17[%c15, %c0_79] : memref<16x100xf32, #tpu.memory_space<vmem>>, vector<1x100xf32>
    tpu.vector_store %arg17[%c15, %c0_79], %78 {strides = array<i32>} : memref<16x100xf32, #tpu.memory_space<vmem>>, vector<1x100xf32>,
    %c0_80 = arith.constant 0 : index
    %c0_81 = arith.constant 0 : index
    %80 = vector.load %arg4[%c0_80, %c0_81] : memref<2x736xf32, #tpu.memory_space<vmem>>, vector<2x736xf32>
    %c0_82 = arith.constant 0 : index
    %c0_83 = arith.constant 0 : index
    %81 = vector.load %arg5[%c0_82, %c0_83] : memref<736x32xf32, #tpu.memory_space<vmem>>, vector<736x32xf32>
    %cst = arith.constant dense<0.000000e+00> : vector<2x32xf32>
    %82 = tpu.matmul %80, %81, %cst {dimension_numbers = #tpu.dot_dimension_numbers<[1], [0], [0], [1], [0, 0, 1, 1], [], []>} : vector<2x736xf32>, vector<736x32xf32>, vector<2x32xf32> -> vector<2x32xf32>
    %c0_84 = arith.constant 0 : index
    %c0_85 = arith.constant 0 : index
    %83 = vector.load %arg6[%c0_84, %c0_85] : memref<1x32xf32, #tpu.memory_space<vmem>>, vector<1x32xf32>
    %84 = vector.broadcast %83 : vector<1x32xf32> to vector<2x32xf32>
    %85 = arith.addf %82, %84 : vector<2x32xf32>
    %c0_86 = arith.constant 0 : index
    %c0_87 = arith.constant 0 : index
    %86 = vector.load %arg2[%c0_86, %c0_87] : memref<2x16xf32, #tpu.memory_space<vmem>>, vector<2x16xf32>
    %c0_88 = arith.constant 0 : index
    %c0_89 = arith.constant 0 : index
    %87 = vector.load %arg7[%c0_88, %c0_89] : memref<16x16xf32, #tpu.memory_space<vmem>>, vector<16x16xf32>
    %cst_90 = arith.constant dense<0.000000e+00> : vector<2x16xf32>
    %88 = tpu.matmul %86, %87, %cst_90 {dimension_numbers = #tpu.dot_dimension_numbers<[1], [0], [0], [1], [0, 0, 1, 1], [], []>} : vector<2x16xf32>, vector<16x16xf32>, vector<2x16xf32> -> vector<2x16xf32>
    %89 = vector.extract_strided_slice %85 {offsets = [0, 0], sizes = [2, 16], strides = [1, 1]} : vector<2x32xf32> to vector<2x16xf32>
    %90 = arith.addf %88, %89 : vector<2x16xf32>
    %c0_91 = arith.constant 0 : index
    %c0_92 = arith.constant 0 : index
    %91 = vector.load %arg3[%c0_91, %c0_92] : memref<2x16xf32, #tpu.memory_space<vmem>>, vector<2x16xf32>
    %c0_93 = arith.constant 0 : index
    %c0_94 = arith.constant 0 : index
    %92 = vector.load %arg8[%c0_93, %c0_94] : memref<16x16xf32, #tpu.memory_space<vmem>>, vector<16x16xf32>
    %cst_95 = arith.constant dense<0.000000e+00> : vector<2x16xf32>
    %93 = tpu.matmul %91, %92, %cst_95 {dimension_numbers = #tpu.dot_dimension_numbers<[1], [0], [0], [1], [0, 0, 1, 1], [], []>} : vector<2x16xf32>, vector<16x16xf32>, vector<2x16xf32> -> vector<2x16xf32>
    %94 = vector.extract_strided_slice %85 {offsets = [0, 16], sizes = [2, 16], strides = [1, 1]} : vector<2x32xf32> to vector<2x16xf32>
    %95 = arith.addf %93, %94 : vector<2x16xf32>
    %c0_96 = arith.constant 0 : index
    %c0_97 = arith.constant 0 : index
    %96 = vector.load %arg17[%c0_96, %c0_97] : memref<16x100xf32, #tpu.memory_space<vmem>>, vector<16x100xf32>
    %c0_98 = arith.constant 0 : index
    %c0_99 = arith.constant 0 : index
    %97 = vector.load %arg9[%c0_98, %c0_99] : memref<100x64xf32, #tpu.memory_space<vmem>>, vector<100x64xf32>
    %cst_100 = arith.constant dense<0.000000e+00> : vector<16x64xf32>
    %98 = tpu.matmul %96, %97, %cst_100 {dimension_numbers = #tpu.dot_dimension_numbers<[1], [0], [0], [1], [0, 0, 1, 1], [], []>} : vector<16x100xf32>, vector<100x64xf32>, vector<16x64xf32> -> vector<16x64xf32>
    %c0_101 = arith.constant 0 : index
    %c0_102 = arith.constant 0 : index
    %99 = vector.load %arg11[%c0_101, %c0_102] : memref<1x64xf32, #tpu.memory_space<vmem>>, vector<1x64xf32>
    %100 = vector.broadcast %99 : vector<1x64xf32> to vector<16x64xf32>
    %101 = arith.addf %98, %100 : vector<16x64xf32>
    %c0_103 = arith.constant 0 : index
    %c0_104 = arith.constant 0 : index
    %102 = vector.load %arg10[%c0_103, %c0_104] : memref<16x64xf32, #tpu.memory_space<vmem>>, vector<16x64xf32>
    %103 = vector.extract_strided_slice %101 {offsets = [0, 0], sizes = [2, 64], strides = [1, 1]} : vector<16x64xf32> to vector<2x64xf32>
    %cst_105 = arith.constant dense<0.000000e+00> : vector<2x64xf32>
    %104 = tpu.matmul %90, %102, %cst_105 {dimension_numbers = #tpu.dot_dimension_numbers<[1], [0], [0], [1], [0, 0, 1, 1], [], []>} : vector<2x16xf32>, vector<16x64xf32>, vector<2x64xf32> -> vector<2x64xf32>
    %105 = arith.addf %103, %104 : vector<2x64xf32>
    %106 = arith.negf %105 : vector<2x64xf32>
    %107 = math.exp %106 : vector<2x64xf32>
    %cst_106 = arith.constant 1.000000e+00 : f32
    %108 = vector.broadcast %cst_106 : f32 to vector<2x64xf32>
    %109 = arith.addf %108, %107 : vector<2x64xf32>
    %110 = arith.divf %108, %109 : vector<2x64xf32>
    %111 = vector.extract_strided_slice %105 {offsets = [0, 32], sizes = [2, 16], strides = [1, 1]} : vector<2x64xf32> to vector<2x16xf32>
    %112 = math.tanh %111 : vector<2x16xf32>
    %113 = vector.extract_strided_slice %110 {offsets = [0, 0], sizes = [2, 16], strides = [1, 1]} : vector<2x64xf32> to vector<2x16xf32>
    %114 = vector.extract_strided_slice %110 {offsets = [0, 16], sizes = [2, 16], strides = [1, 1]} : vector<2x64xf32> to vector<2x16xf32>
    %115 = vector.extract_strided_slice %110 {offsets = [0, 48], sizes = [2, 16], strides = [1, 1]} : vector<2x64xf32> to vector<2x16xf32>
    %116 = arith.mulf %114, %95 : vector<2x16xf32>
    %117 = arith.mulf %113, %112 : vector<2x16xf32>
    %118 = arith.addf %116, %117 : vector<2x16xf32>
    %119 = math.tanh %118 : vector<2x16xf32>
    %120 = arith.mulf %115, %119 : vector<2x16xf32>
    %c0_107 = arith.constant 0 : index
    %c0_108 = arith.constant 0 : index
    %121 = vector.load %arg18[%c0_107, %c0_108] : memref<16x16xf32, #tpu.memory_space<vmem>>, vector<2x16xf32>
    tpu.vector_store %arg18[%c0_107, %c0_108], %120 {strides = array<i32>} : memref<16x16xf32, #tpu.memory_space<vmem>>, vector<2x16xf32>,
    %122 = vector.extract_strided_slice %101 {offsets = [2, 0], sizes = [2, 64], strides = [1, 1]} : vector<16x64xf32> to vector<2x64xf32>
    %cst_109 = arith.constant dense<0.000000e+00> : vector<2x64xf32>
    %123 = tpu.matmul %120, %102, %cst_109 {dimension_numbers = #tpu.dot_dimension_numbers<[1], [0], [0], [1], [0, 0, 1, 1], [], []>} : vector<2x16xf32>, vector<16x64xf32>, vector<2x64xf32> -> vector<2x64xf32>
    %124 = arith.addf %122, %123 : vector<2x64xf32>
    %125 = arith.negf %124 : vector<2x64xf32>
    %126 = math.exp %125 : vector<2x64xf32>
    %cst_110 = arith.constant 1.000000e+00 : f32
    %127 = vector.broadcast %cst_110 : f32 to vector<2x64xf32>
    %128 = arith.addf %127, %126 : vector<2x64xf32>
    %129 = arith.divf %127, %128 : vector<2x64xf32>
    %130 = vector.extract_strided_slice %124 {offsets = [0, 32], sizes = [2, 16], strides = [1, 1]} : vector<2x64xf32> to vector<2x16xf32>
    %131 = math.tanh %130 : vector<2x16xf32>
    %132 = vector.extract_strided_slice %129 {offsets = [0, 0], sizes = [2, 16], strides = [1, 1]} : vector<2x64xf32> to vector<2x16xf32>
    %133 = vector.extract_strided_slice %129 {offsets = [0, 16], sizes = [2, 16], strides = [1, 1]} : vector<2x64xf32> to vector<2x16xf32>
    %134 = vector.extract_strided_slice %129 {offsets = [0, 48], sizes = [2, 16], strides = [1, 1]} : vector<2x64xf32> to vector<2x16xf32>
    %135 = arith.mulf %133, %118 : vector<2x16xf32>
    %136 = arith.mulf %132, %131 : vector<2x16xf32>
    %137 = arith.addf %135, %136 : vector<2x16xf32>
    %138 = math.tanh %137 : vector<2x16xf32>
    %139 = arith.mulf %134, %138 : vector<2x16xf32>
    %c2_111 = arith.constant 2 : index
    %c0_112 = arith.constant 0 : index
    %140 = vector.load %arg18[%c2_111, %c0_112] : memref<16x16xf32, #tpu.memory_space<vmem>>, vector<2x16xf32>
    tpu.vector_store %arg18[%c2_111, %c0_112], %139 {strides = array<i32>} : memref<16x16xf32, #tpu.memory_space<vmem>>, vector<2x16xf32>,
    %141 = vector.extract_strided_slice %101 {offsets = [4, 0], sizes = [2, 64], strides = [1, 1]} : vector<16x64xf32> to vector<2x64xf32>
    %cst_113 = arith.constant dense<0.000000e+00> : vector<2x64xf32>
    %142 = tpu.matmul %139, %102, %cst_113 {dimension_numbers = #tpu.dot_dimension_numbers<[1], [0], [0], [1], [0, 0, 1, 1], [], []>} : vector<2x16xf32>, vector<16x64xf32>, vector<2x64xf32> -> vector<2x64xf32>
    %143 = arith.addf %141, %142 : vector<2x64xf32>
    %144 = arith.negf %143 : vector<2x64xf32>
    %145 = math.exp %144 : vector<2x64xf32>
    %cst_114 = arith.constant 1.000000e+00 : f32
    %146 = vector.broadcast %cst_114 : f32 to vector<2x64xf32>
    %147 = arith.addf %146, %145 : vector<2x64xf32>
    %148 = arith.divf %146, %147 : vector<2x64xf32>
    %149 = vector.extract_strided_slice %143 {offsets = [0, 32], sizes = [2, 16], strides = [1, 1]} : vector<2x64xf32> to vector<2x16xf32>
    %150 = math.tanh %149 : vector<2x16xf32>
    %151 = vector.extract_strided_slice %148 {offsets = [0, 0], sizes = [2, 16], strides = [1, 1]} : vector<2x64xf32> to vector<2x16xf32>
    %152 = vector.extract_strided_slice %148 {offsets = [0, 16], sizes = [2, 16], strides = [1, 1]} : vector<2x64xf32> to vector<2x16xf32>
    %153 = vector.extract_strided_slice %148 {offsets = [0, 48], sizes = [2, 16], strides = [1, 1]} : vector<2x64xf32> to vector<2x16xf32>
    %154 = arith.mulf %152, %137 : vector<2x16xf32>
    %155 = arith.mulf %151, %150 : vector<2x16xf32>
    %156 = arith.addf %154, %155 : vector<2x16xf32>
    %157 = math.tanh %156 : vector<2x16xf32>
    %158 = arith.mulf %153, %157 : vector<2x16xf32>
    %c4_115 = arith.constant 4 : index
    %c0_116 = arith.constant 0 : index
    %159 = vector.load %arg18[%c4_115, %c0_116] : memref<16x16xf32, #tpu.memory_space<vmem>>, vector<2x16xf32>
    tpu.vector_store %arg18[%c4_115, %c0_116], %158 {strides = array<i32>} : memref<16x16xf32, #tpu.memory_space<vmem>>, vector<2x16xf32>,
    %160 = vector.extract_strided_slice %101 {offsets = [6, 0], sizes = [2, 64], strides = [1, 1]} : vector<16x64xf32> to vector<2x64xf32>
    %cst_117 = arith.constant dense<0.000000e+00> : vector<2x64xf32>
    %161 = tpu.matmul %158, %102, %cst_117 {dimension_numbers = #tpu.dot_dimension_numbers<[1], [0], [0], [1], [0, 0, 1, 1], [], []>} : vector<2x16xf32>, vector<16x64xf32>, vector<2x64xf32> -> vector<2x64xf32>
    %162 = arith.addf %160, %161 : vector<2x64xf32>
    %163 = arith.negf %162 : vector<2x64xf32>
    %164 = math.exp %163 : vector<2x64xf32>
    %cst_118 = arith.constant 1.000000e+00 : f32
    %165 = vector.broadcast %cst_118 : f32 to vector<2x64xf32>
    %166 = arith.addf %165, %164 : vector<2x64xf32>
    %167 = arith.divf %165, %166 : vector<2x64xf32>
    %168 = vector.extract_strided_slice %162 {offsets = [0, 32], sizes = [2, 16], strides = [1, 1]} : vector<2x64xf32> to vector<2x16xf32>
    %169 = math.tanh %168 : vector<2x16xf32>
    %170 = vector.extract_strided_slice %167 {offsets = [0, 0], sizes = [2, 16], strides = [1, 1]} : vector<2x64xf32> to vector<2x16xf32>
    %171 = vector.extract_strided_slice %167 {offsets = [0, 16], sizes = [2, 16], strides = [1, 1]} : vector<2x64xf32> to vector<2x16xf32>
    %172 = vector.extract_strided_slice %167 {offsets = [0, 48], sizes = [2, 16], strides = [1, 1]} : vector<2x64xf32> to vector<2x16xf32>
    %173 = arith.mulf %171, %156 : vector<2x16xf32>
    %174 = arith.mulf %170, %169 : vector<2x16xf32>
    %175 = arith.addf %173, %174 : vector<2x16xf32>
    %176 = math.tanh %175 : vector<2x16xf32>
    %177 = arith.mulf %172, %176 : vector<2x16xf32>
    %c6_119 = arith.constant 6 : index
    %c0_120 = arith.constant 0 : index
    %178 = vector.load %arg18[%c6_119, %c0_120] : memref<16x16xf32, #tpu.memory_space<vmem>>, vector<2x16xf32>
    tpu.vector_store %arg18[%c6_119, %c0_120], %177 {strides = array<i32>} : memref<16x16xf32, #tpu.memory_space<vmem>>, vector<2x16xf32>,
    %179 = vector.extract_strided_slice %101 {offsets = [8, 0], sizes = [2, 64], strides = [1, 1]} : vector<16x64xf32> to vector<2x64xf32>
    %cst_121 = arith.constant dense<0.000000e+00> : vector<2x64xf32>
    %180 = tpu.matmul %177, %102, %cst_121 {dimension_numbers = #tpu.dot_dimension_numbers<[1], [0], [0], [1], [0, 0, 1, 1], [], []>} : vector<2x16xf32>, vector<16x64xf32>, vector<2x64xf32> -> vector<2x64xf32>
    %181 = arith.addf %179, %180 : vector<2x64xf32>
    %182 = arith.negf %181 : vector<2x64xf32>
    %183 = math.exp %182 : vector<2x64xf32>
    %cst_122 = arith.constant 1.000000e+00 : f32
    %184 = vector.broadcast %cst_122 : f32 to vector<2x64xf32>
    %185 = arith.addf %184, %183 : vector<2x64xf32>
    %186 = arith.divf %184, %185 : vector<2x64xf32>
    %187 = vector.extract_strided_slice %181 {offsets = [0, 32], sizes = [2, 16], strides = [1, 1]} : vector<2x64xf32> to vector<2x16xf32>
    %188 = math.tanh %187 : vector<2x16xf32>
    %189 = vector.extract_strided_slice %186 {offsets = [0, 0], sizes = [2, 16], strides = [1, 1]} : vector<2x64xf32> to vector<2x16xf32>
    %190 = vector.extract_strided_slice %186 {offsets = [0, 16], sizes = [2, 16], strides = [1, 1]} : vector<2x64xf32> to vector<2x16xf32>
    %191 = vector.extract_strided_slice %186 {offsets = [0, 48], sizes = [2, 16], strides = [1, 1]} : vector<2x64xf32> to vector<2x16xf32>
    %192 = arith.mulf %190, %175 : vector<2x16xf32>
    %193 = arith.mulf %189, %188 : vector<2x16xf32>
    %194 = arith.addf %192, %193 : vector<2x16xf32>
    %195 = math.tanh %194 : vector<2x16xf32>
    %196 = arith.mulf %191, %195 : vector<2x16xf32>
    %c8_123 = arith.constant 8 : index
    %c0_124 = arith.constant 0 : index
    %197 = vector.load %arg18[%c8_123, %c0_124] : memref<16x16xf32, #tpu.memory_space<vmem>>, vector<2x16xf32>
    tpu.vector_store %arg18[%c8_123, %c0_124], %196 {strides = array<i32>} : memref<16x16xf32, #tpu.memory_space<vmem>>, vector<2x16xf32>,
    %198 = vector.extract_strided_slice %101 {offsets = [10, 0], sizes = [2, 64], strides = [1, 1]} : vector<16x64xf32> to vector<2x64xf32>
    %cst_125 = arith.constant dense<0.000000e+00> : vector<2x64xf32>
    %199 = tpu.matmul %196, %102, %cst_125 {dimension_numbers = #tpu.dot_dimension_numbers<[1], [0], [0], [1], [0, 0, 1, 1], [], []>} : vector<2x16xf32>, vector<16x64xf32>, vector<2x64xf32> -> vector<2x64xf32>
    %200 = arith.addf %198, %199 : vector<2x64xf32>
    %201 = arith.negf %200 : vector<2x64xf32>
    %202 = math.exp %201 : vector<2x64xf32>
    %cst_126 = arith.constant 1.000000e+00 : f32
    %203 = vector.broadcast %cst_126 : f32 to vector<2x64xf32>
    %204 = arith.addf %203, %202 : vector<2x64xf32>
    %205 = arith.divf %203, %204 : vector<2x64xf32>
    %206 = vector.extract_strided_slice %200 {offsets = [0, 32], sizes = [2, 16], strides = [1, 1]} : vector<2x64xf32> to vector<2x16xf32>
    %207 = math.tanh %206 : vector<2x16xf32>
    %208 = vector.extract_strided_slice %205 {offsets = [0, 0], sizes = [2, 16], strides = [1, 1]} : vector<2x64xf32> to vector<2x16xf32>
    %209 = vector.extract_strided_slice %205 {offsets = [0, 16], sizes = [2, 16], strides = [1, 1]} : vector<2x64xf32> to vector<2x16xf32>
    %210 = vector.extract_strided_slice %205 {offsets = [0, 48], sizes = [2, 16], strides = [1, 1]} : vector<2x64xf32> to vector<2x16xf32>
    %211 = arith.mulf %209, %194 : vector<2x16xf32>
    %212 = arith.mulf %208, %207 : vector<2x16xf32>
    %213 = arith.addf %211, %212 : vector<2x16xf32>
    %214 = math.tanh %213 : vector<2x16xf32>
    %215 = arith.mulf %210, %214 : vector<2x16xf32>
    %c10_127 = arith.constant 10 : index
    %c0_128 = arith.constant 0 : index
    %216 = vector.load %arg18[%c10_127, %c0_128] : memref<16x16xf32, #tpu.memory_space<vmem>>, vector<2x16xf32>
    tpu.vector_store %arg18[%c10_127, %c0_128], %215 {strides = array<i32>} : memref<16x16xf32, #tpu.memory_space<vmem>>, vector<2x16xf32>,
    %217 = vector.extract_strided_slice %101 {offsets = [12, 0], sizes = [2, 64], strides = [1, 1]} : vector<16x64xf32> to vector<2x64xf32>
    %cst_129 = arith.constant dense<0.000000e+00> : vector<2x64xf32>
    %218 = tpu.matmul %215, %102, %cst_129 {dimension_numbers = #tpu.dot_dimension_numbers<[1], [0], [0], [1], [0, 0, 1, 1], [], []>} : vector<2x16xf32>, vector<16x64xf32>, vector<2x64xf32> -> vector<2x64xf32>
    %219 = arith.addf %217, %218 : vector<2x64xf32>
    %220 = arith.negf %219 : vector<2x64xf32>
    %221 = math.exp %220 : vector<2x64xf32>
    %cst_130 = arith.constant 1.000000e+00 : f32
    %222 = vector.broadcast %cst_130 : f32 to vector<2x64xf32>
    %223 = arith.addf %222, %221 : vector<2x64xf32>
    %224 = arith.divf %222, %223 : vector<2x64xf32>
    %225 = vector.extract_strided_slice %219 {offsets = [0, 32], sizes = [2, 16], strides = [1, 1]} : vector<2x64xf32> to vector<2x16xf32>
    %226 = math.tanh %225 : vector<2x16xf32>
    %227 = vector.extract_strided_slice %224 {offsets = [0, 0], sizes = [2, 16], strides = [1, 1]} : vector<2x64xf32> to vector<2x16xf32>
    %228 = vector.extract_strided_slice %224 {offsets = [0, 16], sizes = [2, 16], strides = [1, 1]} : vector<2x64xf32> to vector<2x16xf32>
    %229 = vector.extract_strided_slice %224 {offsets = [0, 48], sizes = [2, 16], strides = [1, 1]} : vector<2x64xf32> to vector<2x16xf32>
    %230 = arith.mulf %228, %213 : vector<2x16xf32>
    %231 = arith.mulf %227, %226 : vector<2x16xf32>
    %232 = arith.addf %230, %231 : vector<2x16xf32>
    %233 = math.tanh %232 : vector<2x16xf32>
    %234 = arith.mulf %229, %233 : vector<2x16xf32>
    %c12_131 = arith.constant 12 : index
    %c0_132 = arith.constant 0 : index
    %235 = vector.load %arg18[%c12_131, %c0_132] : memref<16x16xf32, #tpu.memory_space<vmem>>, vector<2x16xf32>
    tpu.vector_store %arg18[%c12_131, %c0_132], %234 {strides = array<i32>} : memref<16x16xf32, #tpu.memory_space<vmem>>, vector<2x16xf32>,
    %236 = vector.extract_strided_slice %101 {offsets = [14, 0], sizes = [2, 64], strides = [1, 1]} : vector<16x64xf32> to vector<2x64xf32>
    %cst_133 = arith.constant dense<0.000000e+00> : vector<2x64xf32>
    %237 = tpu.matmul %234, %102, %cst_133 {dimension_numbers = #tpu.dot_dimension_numbers<[1], [0], [0], [1], [0, 0, 1, 1], [], []>} : vector<2x16xf32>, vector<16x64xf32>, vector<2x64xf32> -> vector<2x64xf32>
    %238 = arith.addf %236, %237 : vector<2x64xf32>
    %239 = arith.negf %238 : vector<2x64xf32>
    %240 = math.exp %239 : vector<2x64xf32>
    %cst_134 = arith.constant 1.000000e+00 : f32
    %241 = vector.broadcast %cst_134 : f32 to vector<2x64xf32>
    %242 = arith.addf %241, %240 : vector<2x64xf32>
    %243 = arith.divf %241, %242 : vector<2x64xf32>
    %244 = vector.extract_strided_slice %238 {offsets = [0, 32], sizes = [2, 16], strides = [1, 1]} : vector<2x64xf32> to vector<2x16xf32>
    %245 = math.tanh %244 : vector<2x16xf32>
    %246 = vector.extract_strided_slice %243 {offsets = [0, 0], sizes = [2, 16], strides = [1, 1]} : vector<2x64xf32> to vector<2x16xf32>
    %247 = vector.extract_strided_slice %243 {offsets = [0, 16], sizes = [2, 16], strides = [1, 1]} : vector<2x64xf32> to vector<2x16xf32>
    %248 = vector.extract_strided_slice %243 {offsets = [0, 48], sizes = [2, 16], strides = [1, 1]} : vector<2x64xf32> to vector<2x16xf32>
    %249 = arith.mulf %247, %232 : vector<2x16xf32>
    %250 = arith.mulf %246, %245 : vector<2x16xf32>
    %251 = arith.addf %249, %250 : vector<2x16xf32>
    %252 = math.tanh %251 : vector<2x16xf32>
    %253 = arith.mulf %248, %252 : vector<2x16xf32>
    %c14_135 = arith.constant 14 : index
    %c0_136 = arith.constant 0 : index
    %254 = vector.load %arg18[%c14_135, %c0_136] : memref<16x16xf32, #tpu.memory_space<vmem>>, vector<2x16xf32>
    tpu.vector_store %arg18[%c14_135, %c0_136], %253 {strides = array<i32>} : memref<16x16xf32, #tpu.memory_space<vmem>>, vector<2x16xf32>,
    %c0_137 = arith.constant 0 : index
    %c0_138 = arith.constant 0 : index
    %255 = vector.load %arg18[%c0_137, %c0_138] : memref<16x16xf32, #tpu.memory_space<vmem>>, vector<16x16xf32>
    %c0_139 = arith.constant 0 : index
    %c0_140 = arith.constant 0 : index
    %256 = vector.load %arg12[%c0_139, %c0_140] : memref<16x32xf32, #tpu.memory_space<vmem>>, vector<16x32xf32>
    %cst_141 = arith.constant dense<0.000000e+00> : vector<16x32xf32>
    %257 = tpu.matmul %255, %256, %cst_141 {dimension_numbers = #tpu.dot_dimension_numbers<[1], [0], [0], [1], [0, 0, 1, 1], [], []>} : vector<16x16xf32>, vector<16x32xf32>, vector<16x32xf32> -> vector<16x32xf32>
    %c0_142 = arith.constant 0 : index
    %c0_143 = arith.constant 0 : index
    %258 = vector.load %arg13[%c0_142, %c0_143] : memref<1x32xf32, #tpu.memory_space<vmem>>, vector<1x32xf32>
    %259 = vector.broadcast %258 : vector<1x32xf32> to vector<16x32xf32>
    %260 = arith.addf %257, %259 : vector<16x32xf32>
    %cst_144 = arith.constant 0.000000e+00 : f32
    %261 = vector.broadcast %cst_144 : f32 to vector<16x32xf32>
    %262 = arith.maximumf %260, %261 : vector<16x32xf32>
    %c0_145 = arith.constant 0 : index
    %c0_146 = arith.constant 0 : index
    %263 = vector.load %arg14[%c0_145, %c0_146] : memref<32x128xf32, #tpu.memory_space<vmem>>, vector<32x128xf32>
    %cst_147 = arith.constant dense<0.000000e+00> : vector<16x128xf32>
    %264 = tpu.matmul %262, %263, %cst_147 {dimension_numbers = #tpu.dot_dimension_numbers<[1], [0], [0], [1], [0, 0, 1, 1], [], []>} : vector<16x32xf32>, vector<32x128xf32>, vector<16x128xf32> -> vector<16x128xf32>
    %c0_148 = arith.constant 0 : index
    %c0_149 = arith.constant 0 : index
    %265 = vector.load %arg15[%c0_148, %c0_149] : memref<1x128xf32, #tpu.memory_space<vmem>>, vector<1x128xf32>
    %266 = vector.broadcast %265 : vector<1x128xf32> to vector<16x128xf32>
    %267 = arith.addf %264, %266 : vector<16x128xf32>
    %c0_150 = arith.constant 0 : index
    %c0_151 = arith.constant 0 : index
    %268 = vector.load %arg16[%c0_150, %c0_151] : memref<16x128xf32, #tpu.memory_space<vmem>>, vector<16x128xf32>
    tpu.vector_store %arg16[%c0_150, %c0_151], %267 {strides = array<i32>} : memref<16x128xf32, #tpu.memory_space<vmem>>, vector<16x128xf32>,
    return
  }
}

</mosaic_0001>

<llo_original>
// kernel: tpu_custom_call.1
$region0: #{tpu_custom_call.1}
  #allocation0 [shape = 'u32[]', space=smem, size = 0x4, offset = 0x4, fixed_abs, tag = 'smem constant byte address 0x4 - core index']
  #allocation1 [shape = 'u32[72,128]{1,0:T(1,128)}', space=vmem, size = 0x9000, scoped, tag = 'internal scratch']
  #allocation2 [shape = 'f32[16,100]{1,0:T(8,128)}', space=vmem, size = 0x2000, scoped, tag = 'scratch operand']
  #allocation3 [shape = 'f32[16,16]{1,0:T(8,128)}', space=vmem, size = 0x2000, scoped, tag = 'scratch operand']
  %s0 = inlined_call_operand.vmem [shape: s32[2,8], index: 0, kind: input, shape index: {}]
  %s1 = inlined_call_operand.vmem [shape: f32[50,1,100], index: 1, kind: input, shape index: {}]
  %s2 = inlined_call_operand.vmem [shape: f32[2,16], index: 2, kind: input, shape index: {}]
  %s3 = inlined_call_operand.vmem [shape: f32[2,16], index: 3, kind: input, shape index: {}]
  %s4 = inlined_call_operand.vmem [shape: f32[2,736], index: 4, kind: input, shape index: {}]
  %s5 = inlined_call_operand.vmem [shape: f32[736,32], index: 5, kind: input, shape index: {}]
  %s6 = inlined_call_operand.vmem [shape: f32[1,32], index: 6, kind: input, shape index: {}]
  %s7 = inlined_call_operand.vmem [shape: f32[16,16], index: 7, kind: input, shape index: {}]
  %s8 = inlined_call_operand.vmem [shape: f32[16,16], index: 8, kind: input, shape index: {}]
  %s9 = inlined_call_operand.vmem [shape: f32[100,64], index: 9, kind: input, shape index: {}]
  %s10 = inlined_call_operand.vmem [shape: f32[16,64], index: 10, kind: input, shape index: {}]
  %s11 = inlined_call_operand.vmem [shape: f32[1,64], index: 11, kind: input, shape index: {}]
  %s12 = inlined_call_operand.vmem [shape: f32[16,32], index: 12, kind: input, shape index: {}]
  %s13 = inlined_call_operand.vmem [shape: f32[1,32], index: 13, kind: input, shape index: {}]
  %s14 = inlined_call_operand.vmem [shape: f32[32,128], index: 14, kind: input, shape index: {}]
  %s15 = inlined_call_operand.vmem [shape: f32[1,128], index: 15, kind: input, shape index: {}]
  %s16 = inlined_call_operand.hbm [shape: f32[16,128], index: 16, kind: output, shape index: {}]
  %s17 = sld [smem:[#allocation0]]
  $region78: #{tpu_custom_call.1} parent=0
    _
  %s19 = ssub.s32 1, %s17
  %s20 = scalar_select 0, %s19, %s17
  $region1: #{tpu_custom_call.1} parent=0
    #allocation4 [shape = 'u8[1024]{0}', space=smem, size = 0x400, scoped, tag = 'input window, operand 0, single buffered']
    #allocation5 [shape = 's32[1]{0}', space=sflag, size = 0x4, scoped, tag = 'scoped memory for tpu_custom_call.1']
    #allocation6 [shape = 's32[1]{0}', space=sflag, size = 0x4, scoped, tag = 'scoped memory for tpu_custom_call.1']
    #allocation7 [shape = 'u8[8192]{0}', space=vmem, size = 0x2000, scoped, tag = 'output window, operand 0, single buffered']
    %21 = vsyncpa [#allocation6], 0
    %22 = vsyncpa [#allocation5], 0
    // Predicated region
    $region2: #{tpu_custom_call.1} parent=1 // pred_check
      _
    $region3: #{tpu_custom_call.1} parent=1 // pred_check_branch
      %24 = sbr.rel (0) target = $region5
    $region4: #{tpu_custom_call.1} parent=1 // pred_region
      %26 = vsyncadd [#allocation6], 0
      %s28 = sshll.u32 %s0, 4
      %s29 = int_to_ptr.vmem [resolvable:$true] %s28
      %31 = dma.vmem_to_smem %s29, 32, [#allocation4], [#allocation6]
    $region5: #{tpu_custom_call.1} parent=1 // pred_fallthru
      _
    // Predicated region
    $region6: #{tpu_custom_call.1} parent=1 // pred_check
      _
    $region7: #{tpu_custom_call.1} parent=1 // pred_check_branch
      %33 = sbr.rel (0) target = $region9
    $region8: #{tpu_custom_call.1} parent=1 // pred_region
      _
    $region9: #{tpu_custom_call.1} parent=1 // pred_fallthru
      _
    // Predicated region
    $region10: #{tpu_custom_call.1} parent=1 // pred_check
      _
    $region11: #{tpu_custom_call.1} parent=1 // pred_check_branch
      %35 = sbr.rel (0) target = $region13
    $region12: #{tpu_custom_call.1} parent=1 // pred_region
      _
    $region13: #{tpu_custom_call.1} parent=1 // pred_fallthru
      _
    // Predicated region
    $region14: #{tpu_custom_call.1} parent=1 // pred_check
      _
    $region15: #{tpu_custom_call.1} parent=1 // pred_check_branch
      %37 = sbr.rel (0) target = $region17
    $region16: #{tpu_custom_call.1} parent=1 // pred_region
      _
    $region17: #{tpu_custom_call.1} parent=1 // pred_fallthru
      _
    // Predicated region
    $region18: #{tpu_custom_call.1} parent=1 // pred_check
      _
    $region19: #{tpu_custom_call.1} parent=1 // pred_check_branch
      %39 = sbr.rel (0) target = $region21
    $region20: #{tpu_custom_call.1} parent=1 // pred_region
      _
    $region21: #{tpu_custom_call.1} parent=1 // pred_fallthru
      _
    // Predicated region
    $region22: #{tpu_custom_call.1} parent=1 // pred_check
      _
    $region23: #{tpu_custom_call.1} parent=1 // pred_check_branch
      %41 = sbr.rel (0) target = $region25
    $region24: #{tpu_custom_call.1} parent=1 // pred_region
      _
    $region25: #{tpu_custom_call.1} parent=1 // pred_fallthru
      _
    // Predicated region
    $region26: #{tpu_custom_call.1} parent=1 // pred_check
      _
    $region27: #{tpu_custom_call.1} parent=1 // pred_check_branch
      %43 = sbr.rel (0) target = $region29
    $region28: #{tpu_custom_call.1} parent=1 // pred_region
      _
    $region29: #{tpu_custom_call.1} parent=1 // pred_fallthru
      _
    // Predicated region
    $region30: #{tpu_custom_call.1} parent=1 // pred_check
      _
    $region31: #{tpu_custom_call.1} parent=1 // pred_check_branch
      %45 = sbr.rel (0) target = $region33
    $region32: #{tpu_custom_call.1} parent=1 // pred_region
      _
    $region33: #{tpu_custom_call.1} parent=1 // pred_fallthru
      _
    // Predicated region
    $region34: #{tpu_custom_call.1} parent=1 // pred_check
      _
    $region35: #{tpu_custom_call.1} parent=1 // pred_check_branch
      %47 = sbr.rel (0) target = $region37
    $region36: #{tpu_custom_call.1} parent=1 // pred_region
      _
    $region37: #{tpu_custom_call.1} parent=1 // pred_fallthru
      _
    // Predicated region
    $region38: #{tpu_custom_call.1} parent=1 // pred_check
      _
    $region39: #{tpu_custom_call.1} parent=1 // pred_check_branch
      %49 = sbr.rel (0) target = $region41
    $region40: #{tpu_custom_call.1} parent=1 // pred_region
      _
    $region41: #{tpu_custom_call.1} parent=1 // pred_fallthru
      _
    // Predicated region
    $region42: #{tpu_custom_call.1} parent=1 // pred_check
      _
    $region43: #{tpu_custom_call.1} parent=1 // pred_check_branch
      %51 = sbr.rel (0) target = $region45
    $region44: #{tpu_custom_call.1} parent=1 // pred_region
      _
    $region45: #{tpu_custom_call.1} parent=1 // pred_fallthru
      _
    // Predicated region
    $region46: #{tpu_custom_call.1} parent=1 // pred_check
      _
    $region47: #{tpu_custom_call.1} parent=1 // pred_check_branch
      %53 = sbr.rel (0) target = $region49
    $region48: #{tpu_custom_call.1} parent=1 // pred_region
      _
    $region49: #{tpu_custom_call.1} parent=1 // pred_fallthru
      _
    // Predicated region
    $region50: #{tpu_custom_call.1} parent=1 // pred_check
      _
    $region51: #{tpu_custom_call.1} parent=1 // pred_check_branch
      %55 = sbr.rel (0) target = $region53
    $region52: #{tpu_custom_call.1} parent=1 // pred_region
      _
    $region53: #{tpu_custom_call.1} parent=1 // pred_fallthru
      _
    // Predicated region
    $region54: #{tpu_custom_call.1} parent=1 // pred_check
      _
    $region55: #{tpu_custom_call.1} parent=1 // pred_check_branch
      %57 = sbr.rel (0) target = $region57
    $region56: #{tpu_custom_call.1} parent=1 // pred_region
      _
    $region57: #{tpu_custom_call.1} parent=1 // pred_fallthru
      _
    // Predicated region
    $region58: #{tpu_custom_call.1} parent=1 // pred_check
      _
    $region59: #{tpu_custom_call.1} parent=1 // pred_check_branch
      %59 = sbr.rel (0) target = $region61
    $region60: #{tpu_custom_call.1} parent=1 // pred_region
      _
    $region61: #{tpu_custom_call.1} parent=1 // pred_fallthru
      _
    // Predicated region
    $region62: #{tpu_custom_call.1} parent=1 // pred_check
      _
    $region63: #{tpu_custom_call.1} parent=1 // pred_check_branch
      %61 = sbr.rel (0) target = $region65
    $region64: #{tpu_custom_call.1} parent=1 // pred_region
      _
    $region65: #{tpu_custom_call.1} parent=1 // pred_fallthru
      _
    // Predicated region
    $region66: #{tpu_custom_call.1} parent=1 // pred_check
      _
    $region67: #{tpu_custom_call.1} parent=1 // pred_check_branch
      %63 = sbr.rel (0) target = $region69
    $region68: #{tpu_custom_call.1} parent=1 // pred_region
      %65 = dma.done [#allocation6], 32
    $region69: #{tpu_custom_call.1} parent=1 // pred_fallthru
      _
    %66 = sfence
    %s67 = sld [smem:[#allocation4]]
    %s68 = scalar_lea.vmem %s1, %s67
    %v69 = vld [vmem:[%s68] sm:$0x1]
    %vm70 = vcmask 811008
    %71 = vst.msk [vmem:[#allocation2] sm:$0x1] %vm70, %v69
    %s72 = sld [smem:[#allocation4 + $0x80]]
    %s73 = scalar_lea.vmem %s1, %s72
    %v74 = vld [vmem:[%s73] sm:$0x1]
    %75 = vst.msk [vmem:[#allocation2 + $0x1] sm:$0x1] %vm70, %v74
    %s76 = sld [smem:[#allocation4 + $0x1]]
    %s77 = scalar_lea.vmem %s1, %s76
    %v78 = vld [vmem:[%s77] sm:$0x1]
    %79 = vst.msk [vmem:[#allocation2 + $0x2] sm:$0x1] %vm70, %v78
    %s80 = sld [smem:[#allocation4 + $0x81]]
    %s81 = scalar_lea.vmem %s1, %s80
    %v82 = vld [vmem:[%s81] sm:$0x1]
    %83 = vst.msk [vmem:[#allocation2 + $0x3] sm:$0x1] %vm70, %v82
    %s84 = sld [smem:[#allocation4 + $0x2]]
    %s85 = scalar_lea.vmem %s1, %s84
    %v86 = vld [vmem:[%s85] sm:$0x1]
    %87 = vst.msk [vmem:[#allocation2 + $0x4] sm:$0x1] %vm70, %v86
    %s88 = sld [smem:[#allocation4 + $0x82]]
    %s89 = scalar_lea.vmem %s1, %s88
    %v90 = vld [vmem:[%s89] sm:$0x1]
    %91 = vst.msk [vmem:[#allocation2 + $0x5] sm:$0x1] %vm70, %v90
    %s92 = sld [smem:[#allocation4 + $0x3]]
    %s93 = scalar_lea.vmem %s1, %s92
    %v94 = vld [vmem:[%s93] sm:$0x1]
    %95 = vst.msk [vmem:[#allocation2 + $0x6] sm:$0x1] %vm70, %v94
    %s96 = sld [smem:[#allocation4 + $0x83]]
    %s97 = scalar_lea.vmem %s1, %s96
    %v98 = vld [vmem:[%s97] sm:$0x1]
    %99 = vst.msk [vmem:[#allocation2 + $0x7] sm:$0x1] %vm70, %v98
    %s100 = sld [smem:[#allocation4 + $0x4]]
    %s101 = scalar_lea.vmem %s1, %s100
    %v102 = vld [vmem:[%s101] sm:$0x1]
    %103 = vst.msk [vmem:[#allocation2 + $0x8] sm:$0x1] %vm70, %v102
    %s104 = sld [smem:[#allocation4 + $0x84]]
    %s105 = scalar_lea.vmem %s1, %s104
    %v106 = vld [vmem:[%s105] sm:$0x1]
    %107 = vst.msk [vmem:[#allocation2 + $0x9] sm:$0x1] %vm70, %v106
    %s108 = sld [smem:[#allocation4 + $0x5]]
    %s109 = scalar_lea.vmem %s1, %s108
    %v110 = vld [vmem:[%s109] sm:$0x1]
    %111 = vst.msk [vmem:[#allocation2 + $0xa] sm:$0x1] %vm70, %v110
    %s112 = sld [smem:[#allocation4 + $0x85]]
    %s113 = scalar_lea.vmem %s1, %s112
    %v114 = vld [vmem:[%s113] sm:$0x1]
    %115 = vst.msk [vmem:[#allocation2 + $0xb] sm:$0x1] %vm70, %v114
    %s116 = sld [smem:[#allocation4 + $0x6]]
    %s117 = scalar_lea.vmem %s1, %s116
    %v118 = vld [vmem:[%s117] sm:$0x1]
    %119 = vst.msk [vmem:[#allocation2 + $0xc] sm:$0x1] %vm70, %v118
    %s120 = sld [smem:[#allocation4 + $0x86]]
    %s121 = scalar_lea.vmem %s1, %s120
    %v122 = vld [vmem:[%s121] sm:$0x1]
    %123 = vst.msk [vmem:[#allocation2 + $0xd] sm:$0x1] %vm70, %v122
    %s124 = sld [smem:[#allocation4 + $0x7]]
    %s125 = scalar_lea.vmem %s1, %s124
    %v126 = vld [vmem:[%s125] sm:$0x1]
    %127 = vst.msk [vmem:[#allocation2 + $0xe] sm:$0x1] %vm70, %v126
    %s128 = sld [smem:[#allocation4 + $0x87]]
    %s129 = scalar_lea.vmem %s1, %s128
    %v130 = vld [vmem:[%s129] sm:$0x1]
    %131 = vst.msk [vmem:[#allocation2 + $0xf] sm:$0x1] %vm70, %v130
    %v132 = vld [vmem:[%s4] sm:$0xff]
    %v133 = vld [vmem:[%s4 + $0x8] sm:$0xf]
    %v134 = vld [vmem:[%s5] sm:$0xff]
    %v135 = vld [vmem:[%s5 + $0x8] sm:$0xff]
    %v136 = vld [vmem:[%s5 + $0x10] sm:$0xff]
    %v137 = vld [vmem:[%s5 + $0x18] sm:$0xff]
    %v138 = vld [vmem:[%s5 + $0x20] sm:$0xff]
    %v139 = vld [vmem:[%s5 + $0x28] sm:$0xff]
    %v140 = vld [vmem:[%s5 + $0x30] sm:$0xff]
    %v141 = vld [vmem:[%s5 + $0x38] sm:$0xff]
    %v142 = vld [vmem:[%s5 + $0x40] sm:$0xff]
    %v143 = vld [vmem:[%s5 + $0x48] sm:$0xff]
    %v144 = vld [vmem:[%s5 + $0x50] sm:$0xff]
    %v145 = vld [vmem:[%s5 + $0x58] sm:$0xff]
    %v146 = vld [vmem:[%s5 + $0x60] sm:$0xff]
    %v147 = vld [vmem:[%s5 + $0x68] sm:$0xff]
    %v148 = vld [vmem:[%s5 + $0x70] sm:$0xff]
    %v149 = vld [vmem:[%s5 + $0x78] sm:$0xff]
    %v150 = vld [vmem:[%s5 + $0x80] sm:$0xff]
    %v151 = vld [vmem:[%s5 + $0x88] sm:$0xff]
    %v152 = vld [vmem:[%s5 + $0x90] sm:$0xff]
    %v153 = vld [vmem:[%s5 + $0x98] sm:$0xff]
    %v154 = vld [vmem:[%s5 + $0xa0] sm:$0xff]
    %v155 = vld [vmem:[%s5 + $0xa8] sm:$0xff]
    %v156 = vld [vmem:[%s5 + $0xb0] sm:$0xff]
    %v157 = vld [vmem:[%s5 + $0xb8] sm:$0xff]
    %v158 = vld [vmem:[%s5 + $0xc0] sm:$0xff]
    %v159 = vld [vmem:[%s5 + $0xc8] sm:$0xff]
    %v160 = vld [vmem:[%s5 + $0xd0] sm:$0xff]
    %v161 = vld [vmem:[%s5 + $0xd8] sm:$0xff]
    %v162 = vld [vmem:[%s5 + $0xe0] sm:$0xff]
    %v163 = vld [vmem:[%s5 + $0xe8] sm:$0xff]
    %v164 = vld [vmem:[%s5 + $0xf0] sm:$0xff]
    %v165 = vld [vmem:[%s5 + $0xf8] sm:$0xff]
    %v166 = vld [vmem:[%s5 + $0x100] sm:$0xff]
    %v167 = vld [vmem:[%s5 + $0x108] sm:$0xff]
    %v168 = vld [vmem:[%s5 + $0x110] sm:$0xff]
    %v169 = vld [vmem:[%s5 + $0x118] sm:$0xff]
    %v170 = vld [vmem:[%s5 + $0x120] sm:$0xff]
    %v171 = vld [vmem:[%s5 + $0x128] sm:$0xff]
    %v172 = vld [vmem:[%s5 + $0x130] sm:$0xff]
    %v173 = vld [vmem:[%s5 + $0x138] sm:$0xff]
    %v174 = vld [vmem:[%s5 + $0x140] sm:$0xff]
    %v175 = vld [vmem:[%s5 + $0x148] sm:$0xff]
    %v176 = vld [vmem:[%s5 + $0x150] sm:$0xff]
    %v177 = vld [vmem:[%s5 + $0x158] sm:$0xff]
    %v178 = vld [vmem:[%s5 + $0x160] sm:$0xff]
    %v179 = vld [vmem:[%s5 + $0x168] sm:$0xff]
    %v180 = vld [vmem:[%s5 + $0x170] sm:$0xff]
    %v181 = vld [vmem:[%s5 + $0x178] sm:$0xff]
    %v182 = vld [vmem:[%s5 + $0x180] sm:$0xff]
    %v183 = vld [vmem:[%s5 + $0x188] sm:$0xff]
    %v184 = vld [vmem:[%s5 + $0x190] sm:$0xff]
    %v185 = vld [vmem:[%s5 + $0x198] sm:$0xff]
    %v186 = vld [vmem:[%s5 + $0x1a0] sm:$0xff]
    %v187 = vld [vmem:[%s5 + $0x1a8] sm:$0xff]
    %v188 = vld [vmem:[%s5 + $0x1b0] sm:$0xff]
    %v189 = vld [vmem:[%s5 + $0x1b8] sm:$0xff]
    %v190 = vld [vmem:[%s5 + $0x1c0] sm:$0xff]
    %v191 = vld [vmem:[%s5 + $0x1c8] sm:$0xff]
    %v192 = vld [vmem:[%s5 + $0x1d0] sm:$0xff]
    %v193 = vld [vmem:[%s5 + $0x1d8] sm:$0xff]
    %v194 = vld [vmem:[%s5 + $0x1e0] sm:$0xff]
    %v195 = vld [vmem:[%s5 + $0x1e8] sm:$0xff]
    %v196 = vld [vmem:[%s5 + $0x1f0] sm:$0xff]
    %v197 = vld [vmem:[%s5 + $0x1f8] sm:$0xff]
    %v198 = vld [vmem:[%s5 + $0x200] sm:$0xff]
    %v199 = vld [vmem:[%s5 + $0x208] sm:$0xff]
    %v200 = vld [vmem:[%s5 + $0x210] sm:$0xff]
    %v201 = vld [vmem:[%s5 + $0x218] sm:$0xff]
    %v202 = vld [vmem:[%s5 + $0x220] sm:$0xff]
    %v203 = vld [vmem:[%s5 + $0x228] sm:$0xff]
    %v204 = vld [vmem:[%s5 + $0x230] sm:$0xff]
    %v205 = vld [vmem:[%s5 + $0x238] sm:$0xff]
    %v206 = vld [vmem:[%s5 + $0x240] sm:$0xff]
    %v207 = vld [vmem:[%s5 + $0x248] sm:$0xff]
    %v208 = vld [vmem:[%s5 + $0x250] sm:$0xff]
    %v209 = vld [vmem:[%s5 + $0x258] sm:$0xff]
    %v210 = vld [vmem:[%s5 + $0x260] sm:$0xff]
    %v211 = vld [vmem:[%s5 + $0x268] sm:$0xff]
    %v212 = vld [vmem:[%s5 + $0x270] sm:$0xff]
    %v213 = vld [vmem:[%s5 + $0x278] sm:$0xff]
    %v214 = vld [vmem:[%s5 + $0x280] sm:$0xff]
    %v215 = vld [vmem:[%s5 + $0x288] sm:$0xff]
    %v216 = vld [vmem:[%s5 + $0x290] sm:$0xff]
    %v217 = vld [vmem:[%s5 + $0x298] sm:$0xff]
    %v218 = vld [vmem:[%s5 + $0x2a0] sm:$0xff]
    %v219 = vld [vmem:[%s5 + $0x2a8] sm:$0xff]
    %v220 = vld [vmem:[%s5 + $0x2b0] sm:$0xff]
    %v221 = vld [vmem:[%s5 + $0x2b8] sm:$0xff]
    %v222 = vld [vmem:[%s5 + $0x2c0] sm:$0xff]
    %v223 = vld [vmem:[%s5 + $0x2c8] sm:$0xff]
    %v224 = vld [vmem:[%s5 + $0x2d0] sm:$0xff]
    %v225 = vld [vmem:[%s5 + $0x2d8] sm:$0xff]
    %v226 = vld [vmem:[%s6] sm:$0x1]
    %v228 = vperm.slane %v226, 0
    %232 = vst [vmem:[#allocation1] ss:$4 sm:$0xff] %v132
    %s233 = scalar_lea.vmem [#allocation1], 32
    %234 = vst [vmem:[%s233] ss:$4 sm:$0xff] %v133
    %v235 = vld.sshfl [vmem:[#allocation1] sm:$0xff pattern:$0x73625140]
    %v236 = vld.sshfl [vmem:[#allocation1 + $0x8] sm:$0xff pattern:$0x73625140]
    %v237 = vld.sshfl [vmem:[#allocation1 + $0x10] sm:$0xff pattern:$0x73625140]
    %v238 = vld.sshfl [vmem:[#allocation1 + $0x18] sm:$0xff pattern:$0x73625140]
    %v239 = vld.sshfl [vmem:[#allocation1 + $0x20] sm:$0xff pattern:$0x73625140]
    %v240 = vld.sshfl [vmem:[#allocation1 + $0x28] sm:$0xff pattern:$0x73625140]
    %vm246 = vcmask 785408
    %v247 = vsel %vm246, %v240, 0
    %249 = vmatpush.msra.mxu0 %v149
    %250 = vmatpush.msra.mxu0 %v148
    %251 = vmatpush.msra.mxu0 %v147
    %252 = vmatpush.msra.mxu0 %v146
    %253 = vmatpush.msra.mxu0 %v145
    %254 = vmatpush.msra.mxu0 %v144
    %255 = vmatpush.msra.mxu0 %v143
    %256 = vmatpush.msra.mxu0 %v142
    %257 = vmatpush.msra.mxu0 %v141
    %258 = vmatpush.msra.mxu0 %v140
    %259 = vmatpush.msra.mxu0 %v139
    %260 = vmatpush.msra.mxu0 %v138
    %261 = vmatpush.msra.mxu0 %v137
    %262 = vmatpush.msra.mxu0 %v136
    %263 = vmatpush.msra.mxu0 %v135
    %264 = vmatpush.msra.mxu0 %v134
    %265 = vmatmul.f32.gmra.mxu0 %v235
    %v266 = vpop.f32.mrf.mxu0
    %v267 = vadd.f32 %v228, %v266
    %268 = vdwg.mxu0
    %269 = vmatpush.msra.mxu0 %v165
    %270 = vmatpush.msra.mxu0 %v164
    %271 = vmatpush.msra.mxu0 %v163
    %272 = vmatpush.msra.mxu0 %v162
    %273 = vmatpush.msra.mxu0 %v161
    %274 = vmatpush.msra.mxu0 %v160
    %275 = vmatpush.msra.mxu0 %v159
    %276 = vmatpush.msra.mxu0 %v158
    %277 = vmatpush.msra.mxu0 %v157
    %278 = vmatpush.msra.mxu0 %v156
    %279 = vmatpush.msra.mxu0 %v155
    %280 = vmatpush.msra.mxu0 %v154
    %281 = vmatpush.msra.mxu0 %v153
    %282 = vmatpush.msra.mxu0 %v152
    %283 = vmatpush.msra.mxu0 %v151
    %284 = vmatpush.msra.mxu0 %v150
    %285 = vmatmul.f32.gmra.mxu0 %v236
    %v286 = vpop.f32.mrf.mxu0
    %v287 = vadd.f32 %v267, %v286
    %288 = vdwg.mxu0
    %289 = vmatpush.msra.mxu0 %v181
    %290 = vmatpush.msra.mxu0 %v180
    %291 = vmatpush.msra.mxu0 %v179
    %292 = vmatpush.msra.mxu0 %v178
    %293 = vmatpush.msra.mxu0 %v177
    %294 = vmatpush.msra.mxu0 %v176
    %295 = vmatpush.msra.mxu0 %v175
    %296 = vmatpush.msra.mxu0 %v174
    %297 = vmatpush.msra.mxu0 %v173
    %298 = vmatpush.msra.mxu0 %v172
    %299 = vmatpush.msra.mxu0 %v171
    %300 = vmatpush.msra.mxu0 %v170
    %301 = vmatpush.msra.mxu0 %v169
    %302 = vmatpush.msra.mxu0 %v168
    %303 = vmatpush.msra.mxu0 %v167
    %304 = vmatpush.msra.mxu0 %v166
    %305 = vmatmul.f32.gmra.mxu0 %v237
    %v306 = vpop.f32.mrf.mxu0
    %v307 = vadd.f32 %v287, %v306
    %308 = vdwg.mxu0
    %309 = vmatpush.msra.mxu0 %v197
    %310 = vmatpush.msra.mxu0 %v196
    %311 = vmatpush.msra.mxu0 %v195
    %312 = vmatpush.msra.mxu0 %v194
    %313 = vmatpush.msra.mxu0 %v193
    %314 = vmatpush.msra.mxu0 %v192
    %315 = vmatpush.msra.mxu0 %v191
    %316 = vmatpush.msra.mxu0 %v190
    %317 = vmatpush.msra.mxu0 %v189
    %318 = vmatpush.msra.mxu0 %v188
    %319 = vmatpush.msra.mxu0 %v187
    %320 = vmatpush.msra.mxu0 %v186
    %321 = vmatpush.msra.mxu0 %v185
    %322 = vmatpush.msra.mxu0 %v184
    %323 = vmatpush.msra.mxu0 %v183
    %324 = vmatpush.msra.mxu0 %v182
    %325 = vmatmul.f32.gmra.mxu0 %v238
    %v326 = vpop.f32.mrf.mxu0
    %v327 = vadd.f32 %v307, %v326
    %328 = vdwg.mxu0
    %329 = vmatpush.msra.mxu0 %v213
    %330 = vmatpush.msra.mxu0 %v212
    %331 = vmatpush.msra.mxu0 %v211
    %332 = vmatpush.msra.mxu0 %v210
    %333 = vmatpush.msra.mxu0 %v209
    %334 = vmatpush.msra.mxu0 %v208
    %335 = vmatpush.msra.mxu0 %v207
    %336 = vmatpush.msra.mxu0 %v206
    %337 = vmatpush.msra.mxu0 %v205
    %338 = vmatpush.msra.mxu0 %v204
    %339 = vmatpush.msra.mxu0 %v203
    %340 = vmatpush.msra.mxu0 %v202
    %341 = vmatpush.msra.mxu0 %v201
    %342 = vmatpush.msra.mxu0 %v200
    %343 = vmatpush.msra.mxu0 %v199
    %344 = vmatpush.msra.mxu0 %v198
    %345 = vmatmul.f32.gmra.mxu0 %v239
    %v346 = vpop.f32.mrf.mxu0
    %v347 = vadd.f32 %v327, %v346
    %348 = vdwg.mxu0
    %349 = vmatpush.msra.mxu0 0.0
    %350 = vmatpush.msra.mxu0 0.0
    %351 = vmatpush.msra.mxu0 0.0
    %352 = vmatpush.msra.mxu0 0.0
    %353 = vmatpush.msra.mxu0 %v225
    %354 = vmatpush.msra.mxu0 %v224
    %355 = vmatpush.msra.mxu0 %v223
    %356 = vmatpush.msra.mxu0 %v222
    %357 = vmatpush.msra.mxu0 %v221
    %358 = vmatpush.msra.mxu0 %v220
    %359 = vmatpush.msra.mxu0 %v219
    %360 = vmatpush.msra.mxu0 %v218
    %361 = vmatpush.msra.mxu0 %v217
    %362 = vmatpush.msra.mxu0 %v216
    %363 = vmatpush.msra.mxu0 %v215
    %364 = vmatpush.msra.mxu0 %v214
    %365 = vmatmul.f32.gmra.mxu0 %v247
    %v366 = vpop.f32.mrf.mxu0
    %v367 = vadd.f32 %v347, %v366
    %368 = vdwg.mxu0
    %v369 = vld [vmem:[%s2] sm:$0x3]
    %v370 = vld [vmem:[%s7] sm:$0xff]
    %v371 = vld [vmem:[%s7 + $0x8] sm:$0xff]
    %vm372 = vcmask 130048
    %v374 = vsel %vm372, %v369, 0
    %376 = vmatpush.msra.mxu0 0.0
    %377 = vmatpush.msra.mxu0 0.0
    %378 = vmatpush.msra.mxu0 0.0
    %379 = vmatpush.msra.mxu0 0.0
    %380 = vmatpush.msra.mxu0 0.0
    %381 = vmatpush.msra.mxu0 0.0
    %382 = vmatpush.msra.mxu0 0.0
    %383 = vmatpush.msra.mxu0 0.0
    %384 = vmatpush.msra.mxu0 0.0
    %385 = vmatpush.msra.mxu0 0.0
    %386 = vmatpush.msra.mxu0 0.0
    %387 = vmatpush.msra.mxu0 0.0
    %388 = vmatpush.msra.mxu0 0.0
    %389 = vmatpush.msra.mxu0 0.0
    %390 = vmatpush.msra.mxu0 %v371
    %391 = vmatpush.msra.mxu0 %v370
    %392 = vmatmul.f32.gmra.mxu0 %v374
    %v393 = vpop.f32.mrf.mxu0
    %v394 = vadd.f32 %v367, %v393
    %395 = vdwg.mxu0
    %v396 = vld [vmem:[%s3] sm:$0x3]
    %v397 = vld [vmem:[%s8] sm:$0xff]
    %v398 = vld [vmem:[%s8 + $0x8] sm:$0xff]
    %400 = vrot.lane.b32.xlu0 %v367, 112
    %v401 = vpop.permute.xlu0 %400
    %v404 = vsel %vm372, %v396, 0
    %406 = vmatpush.msra.mxu0 0.0
    %407 = vmatpush.msra.mxu0 0.0
    %408 = vmatpush.msra.mxu0 0.0
    %409 = vmatpush.msra.mxu0 0.0
    %410 = vmatpush.msra.mxu0 0.0
    %411 = vmatpush.msra.mxu0 0.0
    %412 = vmatpush.msra.mxu0 0.0
    %413 = vmatpush.msra.mxu0 0.0
    %414 = vmatpush.msra.mxu0 0.0
    %415 = vmatpush.msra.mxu0 0.0
    %416 = vmatpush.msra.mxu0 0.0
    %417 = vmatpush.msra.mxu0 0.0
    %418 = vmatpush.msra.mxu0 0.0
    %419 = vmatpush.msra.mxu0 0.0
    %420 = vmatpush.msra.mxu0 %v398
    %421 = vmatpush.msra.mxu0 %v397
    %422 = vmatmul.f32.gmra.mxu0 %v404
    %v423 = vpop.f32.mrf.mxu0
    %v424 = vadd.f32 %v401, %v423
    %425 = vdwg.mxu0
    %v426 = vld [vmem:[#allocation2] sm:$0xff]
    %v427 = vld [vmem:[#allocation2 + $0x8] sm:$0xff]
    %v428 = vld [vmem:[%s9] sm:$0xff]
    %v429 = vld [vmem:[%s9 + $0x8] sm:$0xff]
    %v430 = vld [vmem:[%s9 + $0x10] sm:$0xff]
    %v431 = vld [vmem:[%s9 + $0x18] sm:$0xff]
    %v432 = vld [vmem:[%s9 + $0x20] sm:$0xff]
    %v433 = vld [vmem:[%s9 + $0x28] sm:$0xff]
    %v434 = vld [vmem:[%s9 + $0x30] sm:$0xff]
    %v435 = vld [vmem:[%s9 + $0x38] sm:$0xff]
    %v436 = vld [vmem:[%s9 + $0x40] sm:$0xff]
    %v437 = vld [vmem:[%s9 + $0x48] sm:$0xff]
    %v438 = vld [vmem:[%s9 + $0x50] sm:$0xff]
    %v439 = vld [vmem:[%s9 + $0x58] sm:$0xff]
    %v440 = vld [vmem:[%s9 + $0x60] sm:$0xf]
    %v441 = vld [vmem:[%s11] sm:$0x1]
    %v443 = vperm.slane %v441, 0
    %vm445 = vcmask 818176
    %v447 = vsel %vm445, %v426, 0
    %v450 = vsel %vm445, %v427, 0
    %vm452 = vcmask 1043456
    %v454 = vsel %vm452, %v440, 0
    %456 = vmatpush.msra.mxu0 0.0
    %457 = vmatpush.msra.mxu0 0.0
    %458 = vmatpush.msra.mxu0 0.0
    %459 = vmatpush.msra.mxu0 %v454
    %460 = vmatpush.msra.mxu0 %v439
    %461 = vmatpush.msra.mxu0 %v438
    %462 = vmatpush.msra.mxu0 %v437
    %463 = vmatpush.msra.mxu0 %v436
    %464 = vmatpush.msra.mxu0 %v435
    %465 = vmatpush.msra.mxu0 %v434
    %466 = vmatpush.msra.mxu0 %v433
    %467 = vmatpush.msra.mxu0 %v432
    %468 = vmatpush.msra.mxu0 %v431
    %469 = vmatpush.msra.mxu0 %v430
    %470 = vmatpush.msra.mxu0 %v429
    %471 = vmatpush.msra.mxu0 %v428
    %472 = vmatmul.f32.gmra.mxu0 %v447
    %v473 = vpop.f32.mrf.mxu0
    %v474 = vadd.f32 %v443, %v473
    %475 = vmatmul.f32.gmra.mxu0 %v450
    %v476 = vpop.f32.mrf.mxu0
    %v477 = vadd.f32 %v443, %v476
    %478 = vdwg.mxu0
    %v479 = vld [vmem:[%s10] sm:$0xff]
    %v480 = vld [vmem:[%s10 + $0x8] sm:$0xff]
    %v482 = vsel %vm372, %v394, 0
    %484 = vmatpush.msra.mxu0 0.0
    %485 = vmatpush.msra.mxu0 0.0
    %486 = vmatpush.msra.mxu0 0.0
    %487 = vmatpush.msra.mxu0 0.0
    %488 = vmatpush.msra.mxu0 0.0
    %489 = vmatpush.msra.mxu0 0.0
    %490 = vmatpush.msra.mxu0 0.0
    %491 = vmatpush.msra.mxu0 0.0
    %492 = vmatpush.msra.mxu0 0.0
    %493 = vmatpush.msra.mxu0 0.0
    %494 = vmatpush.msra.mxu0 0.0
    %495 = vmatpush.msra.mxu0 0.0
    %496 = vmatpush.msra.mxu0 0.0
    %497 = vmatpush.msra.mxu0 0.0
    %498 = vmatpush.msra.mxu0 %v480
    %499 = vmatpush.msra.mxu0 %v479
    %500 = vmatmul.f32.gmra.mxu0 %v482
    %v501 = vpop.f32.mrf.mxu0
    %v502 = vadd.f32 0.0, %v501
    %503 = vdwg.mxu0
    %v504 = vadd.f32 %v474, %v502
    %v505 = vxor.u32 %v504, 2147483648
    %v506 = vmul.f32 %v505, 1.442695
    %v507 = vpow.pop %v506
    %v508 = vadd.f32 %v507, 1.0
    %v509 = vrcp.pop %v508
    %v510 = vmul.f32 %v508, %v509
    %v511 = vsub.f32 1.0, %v510
    %v512 = vmul.f32 %v509, %v511
    %v513 = vadd.f32 %v509, %v512
    %vm514 = vweird.f32 %v508
    %vm515 = vweird.f32 %v509
    %vm516 = vmor %vm514, %vm515
    %v517 = vsel %vm516, %v509, %v513
    %v518 = vand.u32 2147483647, %v508
    %vm519 = vcmp.eq.f32.partialorder %v518, 8.507059e+37
    %v520 = vand.u32 %v508, 2147483648
    %v521 = vor.u32 1.1754944e-38, %v520
    %v522 = vsel %vm519, %v521, %v517
    %v523 = vmul.f32 1.0, %v522
    %v524 = vtanh.pop %v504
    %526 = vrot.lane.b32.xlu0 %v424, 16
    %v527 = vpop.permute.xlu0 %526
    %v529 = vmul.f32 %v523, %v527
    %531 = vrot.lane.b32.xlu0 %v524, 96
    %v532 = vpop.permute.xlu0 %531
    %v534 = vmul.f32 %v523, %v532
    %536 = vrot.lane.b32.xlu0 %v534, 16
    %v537 = vpop.permute.xlu0 %536
    %v539 = vadd.f32 %v529, %v537
    %v540 = vtanh.pop %v539
    %542 = vrot.lane.b32.xlu0 %v540, 32
    %v543 = vpop.permute.xlu0 %542
    %v545 = vmul.f32 %v523, %v543
    %547 = vrot.lane.b32.xlu0 %v545, 80
    %v548 = vpop.permute.xlu0 %547
    %vm550 = vcmask 123904
    %551 = vst.msk [vmem:[#allocation3] sm:$0x3] %vm550, %v548
    %v552 = vsel %vm372, %v548, 0
    %554 = vmatpush.msra.mxu0 0.0
    %555 = vmatpush.msra.mxu0 0.0
    %556 = vmatpush.msra.mxu0 0.0
    %557 = vmatpush.msra.mxu0 0.0
    %558 = vmatpush.msra.mxu0 0.0
    %559 = vmatpush.msra.mxu0 0.0
    %560 = vmatpush.msra.mxu0 0.0
    %561 = vmatpush.msra.mxu0 0.0
    %562 = vmatpush.msra.mxu0 0.0
    %563 = vmatpush.msra.mxu0 0.0
    %564 = vmatpush.msra.mxu0 0.0
    %565 = vmatpush.msra.mxu0 0.0
    %566 = vmatpush.msra.mxu0 0.0
    %567 = vmatpush.msra.mxu0 0.0
    %568 = vmatpush.msra.mxu0 %v480
    %569 = vmatpush.msra.mxu0 %v479
    %570 = vmatmul.f32.gmra.mxu0 %v552
    %v571 = vpop.f32.mrf.mxu0
    %v572 = vadd.f32 0.0, %v571
    %573 = vdwg.mxu0
    %v575 = vrot.slane %v572, 6
    %v577 = vadd.f32 %v474, %v575
    %v578 = vxor.u32 %v577, 2147483648
    %v579 = vmul.f32 %v578, 1.442695
    %v580 = vpow.pop %v579
    %v581 = vadd.f32 %v580, 1.0
    %v582 = vrcp.pop %v581
    %v583 = vmul.f32 %v581, %v582
    %v584 = vsub.f32 1.0, %v583
    %v585 = vmul.f32 %v582, %v584
    %v586 = vadd.f32 %v582, %v585
    %vm587 = vweird.f32 %v581
    %vm588 = vweird.f32 %v582
    %vm589 = vmor %vm587, %vm588
    %v590 = vsel %vm589, %v582, %v586
    %v591 = vand.u32 2147483647, %v581
    %vm592 = vcmp.eq.f32.partialorder %v591, 8.507059e+37
    %v593 = vand.u32 %v581, 2147483648
    %v594 = vor.u32 1.1754944e-38, %v593
    %v595 = vsel %vm592, %v594, %v590
    %v596 = vmul.f32 1.0, %v595
    %v597 = vtanh.pop %v577
    %v599 = vrot.slane %v539, 6
    %v601 = vmul.f32 %v596, %v599
    %603 = vrot.lane.b32.xlu0 %v597, 96
    %v604 = vpop.permute.xlu0 %603
    %v606 = vmul.f32 %v596, %v604
    %608 = vrot.lane.b32.xlu0 %v606, 16
    %v609 = vpop.permute.xlu0 %608
    %v611 = vadd.f32 %v601, %v609
    %v612 = vtanh.pop %v611
    %614 = vrot.lane.b32.xlu0 %v612, 32
    %v615 = vpop.permute.xlu0 %614
    %v617 = vmul.f32 %v596, %v615
    %619 = vrot.lane.b32.xlu0 %v617, 80
    %v620 = vpop.permute.xlu0 %619
    %vm622 = vcmask 125954
    %623 = vst.msk [vmem:[#allocation3] sm:$0xc] %vm622, %v620
    %v624 = vrot.slane %v617, 2
    %625 = vrot.lane.b32.xlu0 %v624, 80
    %v626 = vpop.permute.xlu0 %625
    %v627 = vsel %vm372, %v626, 0
    %629 = vmatpush.msra.mxu0 0.0
    %630 = vmatpush.msra.mxu0 0.0
    %631 = vmatpush.msra.mxu0 0.0
    %632 = vmatpush.msra.mxu0 0.0
    %633 = vmatpush.msra.mxu0 0.0
    %634 = vmatpush.msra.mxu0 0.0
    %635 = vmatpush.msra.mxu0 0.0
    %636 = vmatpush.msra.mxu0 0.0
    %637 = vmatpush.msra.mxu0 0.0
    %638 = vmatpush.msra.mxu0 0.0
    %639 = vmatpush.msra.mxu0 0.0
    %640 = vmatpush.msra.mxu0 0.0
    %641 = vmatpush.msra.mxu0 0.0
    %642 = vmatpush.msra.mxu0 0.0
    %643 = vmatpush.msra.mxu0 %v480
    %644 = vmatpush.msra.mxu0 %v479
    %645 = vmatmul.f32.gmra.mxu0 %v627
    %v646 = vpop.f32.mrf.mxu0
    %v647 = vadd.f32 0.0, %v646
    %648 = vdwg.mxu0
    %v650 = vrot.slane %v647, 4
    %v652 = vadd.f32 %v474, %v650
    %v653 = vxor.u32 %v652, 2147483648
    %v654 = vmul.f32 %v653, 1.442695
    %v655 = vpow.pop %v654
    %v656 = vadd.f32 %v655, 1.0
    %v657 = vrcp.pop %v656
    %v658 = vmul.f32 %v656, %v657
    %v659 = vsub.f32 1.0, %v658
    %v660 = vmul.f32 %v657, %v659
    %v661 = vadd.f32 %v657, %v660
    %vm662 = vweird.f32 %v656
    %vm663 = vweird.f32 %v657
    %vm664 = vmor %vm662, %vm663
    %v665 = vsel %vm664, %v657, %v661
    %v666 = vand.u32 2147483647, %v656
    %vm667 = vcmp.eq.f32.partialorder %v666, 8.507059e+37
    %v668 = vand.u32 %v656, 2147483648
    %v669 = vor.u32 1.1754944e-38, %v668
    %v670 = vsel %vm667, %v669, %v665
    %v671 = vmul.f32 1.0, %v670
    %v672 = vtanh.pop %v652
    %v674 = vrot.slane %v611, 6
    %v676 = vmul.f32 %v671, %v674
    %678 = vrot.lane.b32.xlu0 %v672, 96
    %v679 = vpop.permute.xlu0 %678
    %v681 = vmul.f32 %v671, %v679
    %683 = vrot.lane.b32.xlu0 %v681, 16
    %v684 = vpop.permute.xlu0 %683
    %v686 = vadd.f32 %v676, %v684
    %v687 = vtanh.pop %v686
    %689 = vrot.lane.b32.xlu0 %v687, 32
    %v690 = vpop.permute.xlu0 %689
    %v692 = vmul.f32 %v671, %v690
    %694 = vrot.lane.b32.xlu0 %v692, 80
    %v695 = vpop.permute.xlu0 %694
    %vm697 = vcmask 128004
    %698 = vst.msk [vmem:[#allocation3] sm:$0x30] %vm697, %v695
    %v699 = vrot.slane %v692, 4
    %700 = vrot.lane.b32.xlu0 %v699, 80
    %v701 = vpop.permute.xlu0 %700
    %v702 = vsel %vm372, %v701, 0
    %704 = vmatpush.msra.mxu0 0.0
    %705 = vmatpush.msra.mxu0 0.0
    %706 = vmatpush.msra.mxu0 0.0
    %707 = vmatpush.msra.mxu0 0.0
    %708 = vmatpush.msra.mxu0 0.0
    %709 = vmatpush.msra.mxu0 0.0
    %710 = vmatpush.msra.mxu0 0.0
    %711 = vmatpush.msra.mxu0 0.0
    %712 = vmatpush.msra.mxu0 0.0
    %713 = vmatpush.msra.mxu0 0.0
    %714 = vmatpush.msra.mxu0 0.0
    %715 = vmatpush.msra.mxu0 0.0
    %716 = vmatpush.msra.mxu0 0.0
    %717 = vmatpush.msra.mxu0 0.0
    %718 = vmatpush.msra.mxu0 %v480
    %719 = vmatpush.msra.mxu0 %v479
    %720 = vmatmul.f32.gmra.mxu0 %v702
    %v721 = vpop.f32.mrf.mxu0
    %v722 = vadd.f32 0.0, %v721
    %723 = vdwg.mxu0
    %v725 = vrot.slane %v722, 2
    %v727 = vadd.f32 %v474, %v725
    %v728 = vxor.u32 %v727, 2147483648
    %v729 = vmul.f32 %v728, 1.442695
    %v730 = vpow.pop %v729
    %v731 = vadd.f32 %v730, 1.0
    %v732 = vrcp.pop %v731
    %v733 = vmul.f32 %v731, %v732
    %v734 = vsub.f32 1.0, %v733
    %v735 = vmul.f32 %v732, %v734
    %v736 = vadd.f32 %v732, %v735
    %vm737 = vweird.f32 %v731
    %vm738 = vweird.f32 %v732
    %vm739 = vmor %vm737, %vm738
    %v740 = vsel %vm739, %v732, %v736
    %v741 = vand.u32 2147483647, %v731
    %vm742 = vcmp.eq.f32.partialorder %v741, 8.507059e+37
    %v743 = vand.u32 %v731, 2147483648
    %v744 = vor.u32 1.1754944e-38, %v743
    %v745 = vsel %vm742, %v744, %v740
    %v746 = vmul.f32 1.0, %v745
    %v747 = vtanh.pop %v727
    %v749 = vrot.slane %v686, 6
    %v751 = vmul.f32 %v746, %v749
    %753 = vrot.lane.b32.xlu0 %v747, 96
    %v754 = vpop.permute.xlu0 %753
    %v756 = vmul.f32 %v746, %v754
    %758 = vrot.lane.b32.xlu0 %v756, 16
    %v759 = vpop.permute.xlu0 %758
    %v761 = vadd.f32 %v751, %v759
    %v762 = vtanh.pop %v761
    %764 = vrot.lane.b32.xlu0 %v762, 32
    %v765 = vpop.permute.xlu0 %764
    %v767 = vmul.f32 %v746, %v765
    %769 = vrot.lane.b32.xlu0 %v767, 80
    %v770 = vpop.permute.xlu0 %769
    %vm772 = vcmask 130054
    %773 = vst.msk [vmem:[#allocation3] sm:$0xc0] %vm772, %v770
    %v774 = vrot.slane %v767, 6
    %775 = vrot.lane.b32.xlu0 %v774, 80
    %v776 = vpop.permute.xlu0 %775
    %v777 = vsel %vm372, %v776, 0
    %779 = vmatpush.msra.mxu0 0.0
    %780 = vmatpush.msra.mxu0 0.0
    %781 = vmatpush.msra.mxu0 0.0
    %782 = vmatpush.msra.mxu0 0.0
    %783 = vmatpush.msra.mxu0 0.0
    %784 = vmatpush.msra.mxu0 0.0
    %785 = vmatpush.msra.mxu0 0.0
    %786 = vmatpush.msra.mxu0 0.0
    %787 = vmatpush.msra.mxu0 0.0
    %788 = vmatpush.msra.mxu0 0.0
    %789 = vmatpush.msra.mxu0 0.0
    %790 = vmatpush.msra.mxu0 0.0
    %791 = vmatpush.msra.mxu0 0.0
    %792 = vmatpush.msra.mxu0 0.0
    %793 = vmatpush.msra.mxu0 %v480
    %794 = vmatpush.msra.mxu0 %v479
    %795 = vmatmul.f32.gmra.mxu0 %v777
    %v796 = vpop.f32.mrf.mxu0
    %v797 = vadd.f32 0.0, %v796
    %798 = vdwg.mxu0
    %v799 = vadd.f32 %v477, %v797
    %v800 = vxor.u32 %v799, 2147483648
    %v801 = vmul.f32 %v800, 1.442695
    %v802 = vpow.pop %v801
    %v803 = vadd.f32 %v802, 1.0
    %v804 = vrcp.pop %v803
    %v805 = vmul.f32 %v803, %v804
    %v806 = vsub.f32 1.0, %v805
    %v807 = vmul.f32 %v804, %v806
    %v808 = vadd.f32 %v804, %v807
    %vm809 = vweird.f32 %v803
    %vm810 = vweird.f32 %v804
    %vm811 = vmor %vm809, %vm810
    %v812 = vsel %vm811, %v804, %v808
    %v813 = vand.u32 2147483647, %v803
    %vm814 = vcmp.eq.f32.partialorder %v813, 8.507059e+37
    %v815 = vand.u32 %v803, 2147483648
    %v816 = vor.u32 1.1754944e-38, %v815
    %v817 = vsel %vm814, %v816, %v812
    %v818 = vmul.f32 1.0, %v817
    %v819 = vtanh.pop %v799
    %v821 = vrot.slane %v761, 6
    %v823 = vmul.f32 %v818, %v821
    %825 = vrot.lane.b32.xlu0 %v819, 96
    %v826 = vpop.permute.xlu0 %825
    %v828 = vmul.f32 %v818, %v826
    %830 = vrot.lane.b32.xlu0 %v828, 16
    %v831 = vpop.permute.xlu0 %830
    %v833 = vadd.f32 %v823, %v831
    %v834 = vtanh.pop %v833
    %836 = vrot.lane.b32.xlu0 %v834, 32
    %v837 = vpop.permute.xlu0 %836
    %v839 = vmul.f32 %v818, %v837
    %841 = vrot.lane.b32.xlu0 %v839, 80
    %v842 = vpop.permute.xlu0 %841
    %844 = vst.msk [vmem:[#allocation3 + $0x8] sm:$0x3] %vm550, %v842
    %v845 = vsel %vm372, %v842, 0
    %847 = vmatpush.msra.mxu0 0.0
    %848 = vmatpush.msra.mxu0 0.0
    %849 = vmatpush.msra.mxu0 0.0
    %850 = vmatpush.msra.mxu0 0.0
    %851 = vmatpush.msra.mxu0 0.0
    %852 = vmatpush.msra.mxu0 0.0
    %853 = vmatpush.msra.mxu0 0.0
    %854 = vmatpush.msra.mxu0 0.0
    %855 = vmatpush.msra.mxu0 0.0
    %856 = vmatpush.msra.mxu0 0.0
    %857 = vmatpush.msra.mxu0 0.0
    %858 = vmatpush.msra.mxu0 0.0
    %859 = vmatpush.msra.mxu0 0.0
    %860 = vmatpush.msra.mxu0 0.0
    %861 = vmatpush.msra.mxu0 %v480
    %862 = vmatpush.msra.mxu0 %v479
    %863 = vmatmul.f32.gmra.mxu0 %v845
    %v864 = vpop.f32.mrf.mxu0
    %v865 = vadd.f32 0.0, %v864
    %866 = vdwg.mxu0
    %v868 = vrot.slane %v865, 6
    %v870 = vadd.f32 %v477, %v868
    %v871 = vxor.u32 %v870, 2147483648
    %v872 = vmul.f32 %v871, 1.442695
    %v873 = vpow.pop %v872
    %v874 = vadd.f32 %v873, 1.0
    %v875 = vrcp.pop %v874
    %v876 = vmul.f32 %v874, %v875
    %v877 = vsub.f32 1.0, %v876
    %v878 = vmul.f32 %v875, %v877
    %v879 = vadd.f32 %v875, %v878
    %vm880 = vweird.f32 %v874
    %vm881 = vweird.f32 %v875
    %vm882 = vmor %vm880, %vm881
    %v883 = vsel %vm882, %v875, %v879
    %v884 = vand.u32 2147483647, %v874
    %vm885 = vcmp.eq.f32.partialorder %v884, 8.507059e+37
    %v886 = vand.u32 %v874, 2147483648
    %v887 = vor.u32 1.1754944e-38, %v886
    %v888 = vsel %vm885, %v887, %v883
    %v889 = vmul.f32 1.0, %v888
    %v890 = vtanh.pop %v870
    %v892 = vrot.slane %v833, 6
    %v894 = vmul.f32 %v889, %v892
    %896 = vrot.lane.b32.xlu0 %v890, 96
    %v897 = vpop.permute.xlu0 %896
    %v899 = vmul.f32 %v889, %v897
    %901 = vrot.lane.b32.xlu0 %v899, 16
    %v902 = vpop.permute.xlu0 %901
    %v904 = vadd.f32 %v894, %v902
    %v905 = vtanh.pop %v904
    %907 = vrot.lane.b32.xlu0 %v905, 32
    %v908 = vpop.permute.xlu0 %907
    %v910 = vmul.f32 %v889, %v908
    %912 = vrot.lane.b32.xlu0 %v910, 80
    %v913 = vpop.permute.xlu0 %912
    %915 = vst.msk [vmem:[#allocation3 + $0x8] sm:$0xc] %vm622, %v913
    %v916 = vrot.slane %v910, 2
    %917 = vrot.lane.b32.xlu0 %v916, 80
    %v918 = vpop.permute.xlu0 %917
    %v919 = vsel %vm372, %v918, 0
    %921 = vmatpush.msra.mxu0 0.0
    %922 = vmatpush.msra.mxu0 0.0
    %923 = vmatpush.msra.mxu0 0.0
    %924 = vmatpush.msra.mxu0 0.0
    %925 = vmatpush.msra.mxu0 0.0
    %926 = vmatpush.msra.mxu0 0.0
    %927 = vmatpush.msra.mxu0 0.0
    %928 = vmatpush.msra.mxu0 0.0
    %929 = vmatpush.msra.mxu0 0.0
    %930 = vmatpush.msra.mxu0 0.0
    %931 = vmatpush.msra.mxu0 0.0
    %932 = vmatpush.msra.mxu0 0.0
    %933 = vmatpush.msra.mxu0 0.0
    %934 = vmatpush.msra.mxu0 0.0
    %935 = vmatpush.msra.mxu0 %v480
    %936 = vmatpush.msra.mxu0 %v479
    %937 = vmatmul.f32.gmra.mxu0 %v919
    %v938 = vpop.f32.mrf.mxu0
    %v939 = vadd.f32 0.0, %v938
    %940 = vdwg.mxu0
    %v942 = vrot.slane %v939, 4
    %v944 = vadd.f32 %v477, %v942
    %v945 = vxor.u32 %v944, 2147483648
    %v946 = vmul.f32 %v945, 1.442695
    %v947 = vpow.pop %v946
    %v948 = vadd.f32 %v947, 1.0
    %v949 = vrcp.pop %v948
    %v950 = vmul.f32 %v948, %v949
    %v951 = vsub.f32 1.0, %v950
    %v952 = vmul.f32 %v949, %v951
    %v953 = vadd.f32 %v949, %v952
    %vm954 = vweird.f32 %v948
    %vm955 = vweird.f32 %v949
    %vm956 = vmor %vm954, %vm955
    %v957 = vsel %vm956, %v949, %v953
    %v958 = vand.u32 2147483647, %v948
    %vm959 = vcmp.eq.f32.partialorder %v958, 8.507059e+37
    %v960 = vand.u32 %v948, 2147483648
    %v961 = vor.u32 1.1754944e-38, %v960
    %v962 = vsel %vm959, %v961, %v957
    %v963 = vmul.f32 1.0, %v962
    %v964 = vtanh.pop %v944
    %v966 = vrot.slane %v904, 6
    %v968 = vmul.f32 %v963, %v966
    %970 = vrot.lane.b32.xlu0 %v964, 96
    %v971 = vpop.permute.xlu0 %970
    %v973 = vmul.f32 %v963, %v971
    %975 = vrot.lane.b32.xlu0 %v973, 16
    %v976 = vpop.permute.xlu0 %975
    %v978 = vadd.f32 %v968, %v976
    %v979 = vtanh.pop %v978
    %981 = vrot.lane.b32.xlu0 %v979, 32
    %v982 = vpop.permute.xlu0 %981
    %v984 = vmul.f32 %v963, %v982
    %986 = vrot.lane.b32.xlu0 %v984, 80
    %v987 = vpop.permute.xlu0 %986
    %989 = vst.msk [vmem:[#allocation3 + $0x8] sm:$0x30] %vm697, %v987
    %v990 = vrot.slane %v984, 4
    %991 = vrot.lane.b32.xlu0 %v990, 80
    %v992 = vpop.permute.xlu0 %991
    %v993 = vsel %vm372, %v992, 0
    %995 = vmatpush.msra.mxu0 0.0
    %996 = vmatpush.msra.mxu0 0.0
    %997 = vmatpush.msra.mxu0 0.0
    %998 = vmatpush.msra.mxu0 0.0
    %999 = vmatpush.msra.mxu0 0.0
    %1000 = vmatpush.msra.mxu0 0.0
    %1001 = vmatpush.msra.mxu0 0.0
    %1002 = vmatpush.msra.mxu0 0.0
    %1003 = vmatpush.msra.mxu0 0.0
    %1004 = vmatpush.msra.mxu0 0.0
    %1005 = vmatpush.msra.mxu0 0.0
    %1006 = vmatpush.msra.mxu0 0.0
    %1007 = vmatpush.msra.mxu0 0.0
    %1008 = vmatpush.msra.mxu0 0.0
    %1009 = vmatpush.msra.mxu0 %v480
    %1010 = vmatpush.msra.mxu0 %v479
    %1011 = vmatmul.f32.gmra.mxu0 %v993
    %v1012 = vpop.f32.mrf.mxu0
    %v1013 = vadd.f32 0.0, %v1012
    %1014 = vdwg.mxu0
    %v1016 = vrot.slane %v1013, 2
    %v1018 = vadd.f32 %v477, %v1016
    %v1019 = vxor.u32 %v1018, 2147483648
    %v1020 = vmul.f32 %v1019, 1.442695
    %v1021 = vpow.pop %v1020
    %v1022 = vadd.f32 %v1021, 1.0
    %v1023 = vrcp.pop %v1022
    %v1024 = vmul.f32 %v1022, %v1023
    %v1025 = vsub.f32 1.0, %v1024
    %v1026 = vmul.f32 %v1023, %v1025
    %v1027 = vadd.f32 %v1023, %v1026
    %vm1028 = vweird.f32 %v1022
    %vm1029 = vweird.f32 %v1023
    %vm1030 = vmor %vm1028, %vm1029
    %v1031 = vsel %vm1030, %v1023, %v1027
    %v1032 = vand.u32 2147483647, %v1022
    %vm1033 = vcmp.eq.f32.partialorder %v1032, 8.507059e+37
    %v1034 = vand.u32 %v1022, 2147483648
    %v1035 = vor.u32 1.1754944e-38, %v1034
    %v1036 = vsel %vm1033, %v1035, %v1031
    %v1037 = vmul.f32 1.0, %v1036
    %v1038 = vtanh.pop %v1018
    %v1040 = vrot.slane %v978, 6
    %v1042 = vmul.f32 %v1037, %v1040
    %1044 = vrot.lane.b32.xlu0 %v1038, 96
    %v1045 = vpop.permute.xlu0 %1044
    %v1047 = vmul.f32 %v1037, %v1045
    %1049 = vrot.lane.b32.xlu0 %v1047, 16
    %v1050 = vpop.permute.xlu0 %1049
    %v1052 = vadd.f32 %v1042, %v1050
    %v1053 = vtanh.pop %v1052
    %1055 = vrot.lane.b32.xlu0 %v1053, 32
    %v1056 = vpop.permute.xlu0 %1055
    %v1058 = vmul.f32 %v1037, %v1056
    %1060 = vrot.lane.b32.xlu0 %v1058, 80
    %v1061 = vpop.permute.xlu0 %1060
    %1063 = vst.msk [vmem:[#allocation3 + $0x8] sm:$0xc0] %vm772, %v1061
    %v1064 = vld [vmem:[#allocation3] sm:$0xff]
    %v1065 = vld [vmem:[#allocation3 + $0x8] sm:$0xff]
    %v1066 = vld [vmem:[%s12] sm:$0xff]
    %v1067 = vld [vmem:[%s12 + $0x8] sm:$0xff]
    %v1068 = vld [vmem:[%s13] sm:$0x1]
    %v1070 = vperm.slane %v1068, 0
    %v1073 = vsel %vm372, %v1064, 0
    %v1076 = vsel %vm372, %v1065, 0
    %1078 = vmatpush.msra.mxu0 0.0
    %1079 = vmatpush.msra.mxu0 0.0
    %1080 = vmatpush.msra.mxu0 0.0
    %1081 = vmatpush.msra.mxu0 0.0
    %1082 = vmatpush.msra.mxu0 0.0
    %1083 = vmatpush.msra.mxu0 0.0
    %1084 = vmatpush.msra.mxu0 0.0
    %1085 = vmatpush.msra.mxu0 0.0
    %1086 = vmatpush.msra.mxu0 0.0
    %1087 = vmatpush.msra.mxu0 0.0
    %1088 = vmatpush.msra.mxu0 0.0
    %1089 = vmatpush.msra.mxu0 0.0
    %1090 = vmatpush.msra.mxu0 0.0
    %1091 = vmatpush.msra.mxu0 0.0
    %1092 = vmatpush.msra.mxu0 %v1067
    %1093 = vmatpush.msra.mxu0 %v1066
    %1094 = vmatmul.f32.gmra.mxu0 %v1073
    %v1095 = vpop.f32.mrf.mxu0
    %v1096 = vadd.f32 %v1070, %v1095
    %1097 = vmatmul.f32.gmra.mxu0 %v1076
    %v1098 = vpop.f32.mrf.mxu0
    %v1099 = vadd.f32 %v1070, %v1098
    %1100 = vdwg.mxu0
    %v1101 = vmax.f32 %v1096, 0.0
    %v1102 = vmax.f32 %v1099, 0.0
    %v1103 = vld [vmem:[%s14] sm:$0xff]
    %v1104 = vld [vmem:[%s14 + $0x8] sm:$0xff]
    %v1105 = vld [vmem:[%s14 + $0x10] sm:$0xff]
    %v1106 = vld [vmem:[%s14 + $0x18] sm:$0xff]
    %v1107 = vld [vmem:[%s15] sm:$0x1]
    %v1109 = vperm.slane %v1107, 0
    %vm1111 = vcmask 261120
    %v1113 = vsel %vm1111, %v1101, 0
    %v1116 = vsel %vm1111, %v1102, 0
    %1118 = vmatpush.msra.mxu0 0.0
    %1119 = vmatpush.msra.mxu0 0.0
    %1120 = vmatpush.msra.mxu0 0.0
    %1121 = vmatpush.msra.mxu0 0.0
    %1122 = vmatpush.msra.mxu0 0.0
    %1123 = vmatpush.msra.mxu0 0.0
    %1124 = vmatpush.msra.mxu0 0.0
    %1125 = vmatpush.msra.mxu0 0.0
    %1126 = vmatpush.msra.mxu0 0.0
    %1127 = vmatpush.msra.mxu0 0.0
    %1128 = vmatpush.msra.mxu0 0.0
    %1129 = vmatpush.msra.mxu0 0.0
    %1130 = vmatpush.msra.mxu0 %v1106
    %1131 = vmatpush.msra.mxu0 %v1105
    %1132 = vmatpush.msra.mxu0 %v1104
    %1133 = vmatpush.msra.mxu0 %v1103
    %1134 = vmatmul.f32.gmra.mxu0 %v1113
    %v1135 = vpop.f32.mrf.mxu0
    %v1136 = vadd.f32 %v1109, %v1135
    %1137 = vmatmul.f32.gmra.mxu0 %v1116
    %v1138 = vpop.f32.mrf.mxu0
    %v1139 = vadd.f32 %v1109, %v1138
    %1140 = vdwg.mxu0
    %1141 = vst [vmem:[#allocation7] sm:$0xff] %v1136
    %1142 = vst [vmem:[#allocation7 + $0x8] sm:$0xff] %v1139
    // Predicated region
    $region70: #{tpu_custom_call.1} parent=1 // pred_check
      _
    $region71: #{tpu_custom_call.1} parent=1 // pred_check_branch
      %1144 = sbr.rel (0) target = $region73
    $region72: #{tpu_custom_call.1} parent=1 // pred_region
      %1146 = vsyncadd [#allocation5], 0
      %s1147 = sshll.u32 [#allocation7], 4
      %s1148 = int_to_ptr.vmem [resolvable:$true] %s1147
      %s1149 = sshll.u32 %s16, 4
      %s1150 = int_to_ptr.hbm [resolvable:$true] %s1149
      %1155 = dma.vmem_to_hbm [thread:$0]  %s1148, 256, %s1150, [#allocation5], 128, 128, 8
    $region73: #{tpu_custom_call.1} parent=1 // pred_fallthru
      _
    // Predicated region
    $region74: #{tpu_custom_call.1} parent=1 // pred_check
      _
    $region75: #{tpu_custom_call.1} parent=1 // pred_check_branch
      %1157 = sbr.rel (0) target = $region77
    $region76: #{tpu_custom_call.1} parent=1 // pred_region
      %1159 = dma.done [#allocation5], 256
    $region77: #{tpu_custom_call.1} parent=1 // pred_fallthru
      _
    %1160 = vsyncpa [#allocation5], 1
    %1161 = vsyncpa [#allocation6], 1

</llo_original>
